<compile_context>
chip_gen: v7x
topology: tpu7x:2x2x1
jax: 0.10.0
libtpu: 0.0.40
codegen_flags: <defaults>
</compile_context>

<pallas_src>
import jax
import jax.numpy as jnp
from jax.experimental import pallas as pl
from jax.experimental.pallas import tpu as pltpu

INPUT_SIZE = 28
HIDDEN = 64
OUT_DIM = 10
OUT_PAD = 128      # lane-dense output slab; sliced back to 10 in the wrapper
SUBLANE = 8


def lstm_kernel(x_ref, wih_ref, whh_ref, b_ref, wout_ref, bout_ref, out_ref):
    """Full forward (input proj + recurrence + output head) in one invocation.

    x_ref   : (T, Bp, I)    raw input, time-major, batch padded to 8 sublanes
    wih_ref : (I, 4H)       W_ih^T
    whh_ref : (H, 4H)       W_hh^T
    b_ref   : (1, 4H)       b_ih + b_hh
    wout_ref: (H, OUT_PAD)  W_out^T, zero-padded to 128 lanes
    bout_ref: (1, OUT_PAD)  b_out, zero-padded
    out_ref : (Bp, OUT_PAD) final logits (lane-dense)
    """
    T, Bp, _ = x_ref.shape

    # Small operands hoisted once; the large recurrent weight (64x256 = 16 f32
    # vregs) is re-loaded from VMEM inside the loop so it is not pinned across
    # the unrolled body (vld slots are plentiful, spills are not).
    wih = wih_ref[...]
    bias = b_ref[...]

    def step(t, carry):
        h, c = carry
        # Input projection for this step: independent of h, so it can be
        # overlapped with the previous step's recurrent dot by the scheduler.
        xg = jnp.dot(x_ref[t], wih, preferred_element_type=jnp.float32)
        # Single recurrent MXU dot on the serial critical path.
        hg = jnp.dot(h, whh_ref[...], preferred_element_type=jnp.float32)
        gates = xg + hg + bias                    # (Bp, 4H), order [i, f, g, o]

        # sigmoid at full vreg width; tanh only on the vreg-aligned g slice
        # (lane offset 128) instead of a duplicated full-width tanh.
        sg = jax.nn.sigmoid(gates)
        g = jnp.tanh(gates[:, 2 * HIDDEN:3 * HIDDEN])

        i = sg[:, 0 * HIDDEN:1 * HIDDEN]
        f = sg[:, 1 * HIDDEN:2 * HIDDEN]
        o = sg[:, 3 * HIDDEN:4 * HIDDEN]

        c_new = f * c + i * g
        h_new = o * jnp.tanh(c_new)
        return (h_new, c_new)

    h0 = jnp.zeros((Bp, HIDDEN), jnp.float32)
    c0 = jnp.zeros((Bp, HIDDEN), jnp.float32)
    # Capped unroll: full unroll for short sequences, bounded code size for long ones.
    h_T, _ = jax.lax.fori_loop(0, T, step, (h0, c0), unroll=min(8, T))

    # Fused output head: Linear(64 -> 10), stored lane-dense (padded to 128).
    out_ref[...] = (
        jnp.dot(h_T, wout_ref[...], preferred_element_type=jnp.float32) + bout_ref[...]
    )


def lstm_forward(x, params):
    """x: (B, T, 28) float32, batch-first (PyTorch convention). Returns (B, 10)."""
    B, T, I = x.shape
    assert I == INPUT_SIZE
    Bp = max(SUBLANE, ((B + SUBLANE - 1) // SUBLANE) * SUBLANE)

    # Time-major, sublane-padded raw input. Only 28 floats/token cross HBM
    # (no (T, B, 4H) x_proj materialization).
    x_tm = jnp.transpose(x.astype(jnp.float32), (1, 0, 2))          # (T, B, I)
    if Bp != B:
        x_tm = jnp.pad(x_tm, ((0, 0), (0, Bp - B), (0, 0)))

    wih_t = params["w_ih"].T.astype(jnp.float32)                     # (I, 4H)
    whh_t = params["w_hh"].T.astype(jnp.float32)                     # (H, 4H)
    bias = (params["b_ih"] + params["b_hh"]).reshape(1, 4 * HIDDEN).astype(jnp.float32)

    wout_t = jnp.zeros((HIDDEN, OUT_PAD), jnp.float32).at[:, :OUT_DIM].set(
        params["w_out"].T.astype(jnp.float32))
    bout = jnp.zeros((1, OUT_PAD), jnp.float32).at[0, :OUT_DIM].set(
        params["b_out"].astype(jnp.float32))

    # Single gridless dispatch: weights + the whole (small) sequence fit in VMEM.
    # TODO(synk): for large T*B add a 'parallel' batch-tile grid axis (2 TCs on
    #   v7x) plus an 'arbitrary' T-chunk axis with h/c carried in VMEM scratch
    #   (pl.when init at chunk 0) so the input stream is double-buffered and stays
    #   under v7x's 64 MiB VMEM.
    # TODO(synk): for batched deployments, cast wih/whh and the h matmul operand to
    #   bf16 (keep f32 accumulation and f32 h/c state); kept f32 here to match the
    #   PyTorch float32 module numerics.
    out_pad = pl.pallas_call(
        lstm_kernel,
        out_shape=jax.ShapeDtypeStruct((Bp, OUT_PAD), jnp.float32),
        in_specs=[pl.BlockSpec(memory_space=pltpu.MemorySpace.VMEM)] * 6,
        out_specs=pl.BlockSpec(memory_space=pltpu.MemorySpace.VMEM),
    )(x_tm, wih_t, whh_t, bias, wout_t, bout)

    return out_pad[:B, :OUT_DIM]


def init_params(key):
    """Deterministic init matching PyTorch shapes (uniform(-1/sqrt(H), 1/sqrt(H)))."""
    k = 1.0 / jnp.sqrt(jnp.float32(HIDDEN))
    keys = jax.random.split(key, 6)
    u = lambda kk, shape: jax.random.uniform(kk, shape, jnp.float32, -k, k)
    return {
        "w_ih": u(keys[0], (4 * HIDDEN, INPUT_SIZE)),
        "w_hh": u(keys[1], (4 * HIDDEN, HIDDEN)),
        "b_ih": u(keys[2], (4 * HIDDEN,)),
        "b_hh": u(keys[3], (4 * HIDDEN,)),
        "w_out": u(keys[4], (OUT_DIM, HIDDEN)),
        "b_out": u(keys[5], (OUT_DIM,)),
    }


def lstm_reference(x, params):
    """Pure-JAX reference of the PyTorch forward (for correctness check)."""
    B, T, I = x.shape
    wih_t = params["w_ih"].T
    whh_t = params["w_hh"].T
    b = params["b_ih"] + params["b_hh"]

    def step(carry, x_t):
        h, c = carry
        gates = x_t @ wih_t + h @ whh_t + b
        i = jax.nn.sigmoid(gates[:, 0 * HIDDEN:1 * HIDDEN])
        f = jax.nn.sigmoid(gates[:, 1 * HIDDEN:2 * HIDDEN])
        g = jnp.tanh(gates[:, 2 * HIDDEN:3 * HIDDEN])
        o = jax.nn.sigmoid(gates[:, 3 * HIDDEN:4 * HIDDEN])
        c = f * c + i * g
        h = o * jnp.tanh(c)
        return (h, c), None

    h0 = jnp.zeros((B, HIDDEN), jnp.float32)
    c0 = jnp.zeros((B, HIDDEN), jnp.float32)
    (h_T, _), _ = jax.lax.scan(step, (h0, c0), jnp.transpose(x, (1, 0, 2)))
    return h_T @ params["w_out"].T + params["b_out"]


if __name__ == "__main__":
    key = jax.random.PRNGKey(0)
    kx, kp = jax.random.split(key)

    B, T = 2, 8
    x = jax.random.normal(kx, (B, T, INPUT_SIZE), jnp.float32)
    params = init_params(kp)

    out = lstm_forward(x, params)
    out = jax.block_until_ready(out)

    # Note: kernel matmuls run in f32 with f32 accumulation; the reference uses
    # XLA's default TPU matmul precision, so a small tolerance is allowed.
    ref = lstm_reference(x, params)
    assert out.shape == (B, OUT_DIM)
    assert jnp.allclose(out, ref, atol=5e-4, rtol=5e-4), "mismatch vs reference"

    print("KERNEL_OK")
</pallas_src>

<mosaic_0001>
module attributes {stable_mosaic.version = 11 : i64} {
  func.func @lstm_kernel(%arg0: memref<8x8x28xf32, #tpu.memory_space<vmem>>, %arg1: memref<28x256xf32, #tpu.memory_space<vmem>>, %arg2: memref<64x256xf32, #tpu.memory_space<vmem>>, %arg3: memref<1x256xf32, #tpu.memory_space<vmem>>, %arg4: memref<64x128xf32, #tpu.memory_space<vmem>>, %arg5: memref<1x128xf32, #tpu.memory_space<vmem>>, %arg6: memref<8x128xf32, #tpu.memory_space<vmem>>) attributes {dimension_semantics = [], scalar_prefetch = 0 : i64, scratch_operands = 0 : i64, tpu.core_type = #tpu.core_type<tc>} {
    %c0 = arith.constant 0 : index
    %c0_0 = arith.constant 0 : index
    %0 = vector.load %arg1[%c0, %c0_0] : memref<28x256xf32, #tpu.memory_space<vmem>>, vector<28x256xf32>
    %c0_1 = arith.constant 0 : index
    %c0_2 = arith.constant 0 : index
    %1 = vector.load %arg3[%c0_1, %c0_2] : memref<1x256xf32, #tpu.memory_space<vmem>>, vector<1x256xf32>
    %cst = arith.constant 0.000000e+00 : f32
    %2 = vector.broadcast %cst : f32 to vector<8x64xf32>
    %cst_3 = arith.constant 0.000000e+00 : f32
    %3 = vector.broadcast %cst_3 : f32 to vector<8x64xf32>
    %c0_i32 = arith.constant 0 : i32
    %4 = arith.index_cast %c0_i32 : i32 to index
    %c0_4 = arith.constant 0 : index
    %c0_5 = arith.constant 0 : index
    %5 = vector.load %arg0[%4, %c0_4, %c0_5] : memref<8x8x28xf32, #tpu.memory_space<vmem>>, vector<1x8x28xf32>
    %6 = vector.shape_cast %5 : vector<1x8x28xf32> to vector<8x28xf32>
    %cst_6 = arith.constant dense<0.000000e+00> : vector<8x256xf32>
    %7 = tpu.matmul %6, %0, %cst_6 {dimension_numbers = #tpu.dot_dimension_numbers<[1], [0], [0], [1], [0, 0, 1, 1], [], []>} : vector<8x28xf32>, vector<28x256xf32>, vector<8x256xf32> -> vector<8x256xf32>
    %c0_7 = arith.constant 0 : index
    %c0_8 = arith.constant 0 : index
    %8 = vector.load %arg2[%c0_7, %c0_8] : memref<64x256xf32, #tpu.memory_space<vmem>>, vector<64x256xf32>
    %cst_9 = arith.constant dense<0.000000e+00> : vector<8x256xf32>
    %9 = tpu.matmul %2, %8, %cst_9 {dimension_numbers = #tpu.dot_dimension_numbers<[1], [0], [0], [1], [0, 0, 1, 1], [], []>} : vector<8x64xf32>, vector<64x256xf32>, vector<8x256xf32> -> vector<8x256xf32>
    %10 = arith.addf %7, %9 : vector<8x256xf32>
    %11 = vector.broadcast %1 : vector<1x256xf32> to vector<8x256xf32>
    %12 = arith.addf %10, %11 : vector<8x256xf32>
    %13 = arith.negf %12 : vector<8x256xf32>
    %14 = math.exp %13 : vector<8x256xf32>
    %cst_10 = arith.constant 1.000000e+00 : f32
    %15 = vector.broadcast %cst_10 : f32 to vector<8x256xf32>
    %16 = arith.addf %15, %14 : vector<8x256xf32>
    %17 = arith.divf %15, %16 : vector<8x256xf32>
    %18 = vector.extract_strided_slice %12 {offsets = [0, 128], sizes = [8, 64], strides = [1, 1]} : vector<8x256xf32> to vector<8x64xf32>
    %19 = math.tanh %18 : vector<8x64xf32>
    %20 = vector.extract_strided_slice %17 {offsets = [0, 0], sizes = [8, 64], strides = [1, 1]} : vector<8x256xf32> to vector<8x64xf32>
    %21 = vector.extract_strided_slice %17 {offsets = [0, 64], sizes = [8, 64], strides = [1, 1]} : vector<8x256xf32> to vector<8x64xf32>
    %22 = vector.extract_strided_slice %17 {offsets = [0, 192], sizes = [8, 64], strides = [1, 1]} : vector<8x256xf32> to vector<8x64xf32>
    %23 = arith.mulf %21, %3 : vector<8x64xf32>
    %24 = arith.mulf %20, %19 : vector<8x64xf32>
    %25 = arith.addf %23, %24 : vector<8x64xf32>
    %26 = math.tanh %25 : vector<8x64xf32>
    %27 = arith.mulf %22, %26 : vector<8x64xf32>
    %c1_i32 = arith.constant 1 : i32
    %28 = arith.index_cast %c1_i32 : i32 to index
    %c0_11 = arith.constant 0 : index
    %c0_12 = arith.constant 0 : index
    %29 = vector.load %arg0[%28, %c0_11, %c0_12] : memref<8x8x28xf32, #tpu.memory_space<vmem>>, vector<1x8x28xf32>
    %30 = vector.shape_cast %29 : vector<1x8x28xf32> to vector<8x28xf32>
    %cst_13 = arith.constant dense<0.000000e+00> : vector<8x256xf32>
    %31 = tpu.matmul %30, %0, %cst_13 {dimension_numbers = #tpu.dot_dimension_numbers<[1], [0], [0], [1], [0, 0, 1, 1], [], []>} : vector<8x28xf32>, vector<28x256xf32>, vector<8x256xf32> -> vector<8x256xf32>
    %c0_14 = arith.constant 0 : index
    %c0_15 = arith.constant 0 : index
    %32 = vector.load %arg2[%c0_14, %c0_15] : memref<64x256xf32, #tpu.memory_space<vmem>>, vector<64x256xf32>
    %cst_16 = arith.constant dense<0.000000e+00> : vector<8x256xf32>
    %33 = tpu.matmul %27, %32, %cst_16 {dimension_numbers = #tpu.dot_dimension_numbers<[1], [0], [0], [1], [0, 0, 1, 1], [], []>} : vector<8x64xf32>, vector<64x256xf32>, vector<8x256xf32> -> vector<8x256xf32>
    %34 = arith.addf %31, %33 : vector<8x256xf32>
    %35 = vector.broadcast %1 : vector<1x256xf32> to vector<8x256xf32>
    %36 = arith.addf %34, %35 : vector<8x256xf32>
    %37 = arith.negf %36 : vector<8x256xf32>
    %38 = math.exp %37 : vector<8x256xf32>
    %cst_17 = arith.constant 1.000000e+00 : f32
    %39 = vector.broadcast %cst_17 : f32 to vector<8x256xf32>
    %40 = arith.addf %39, %38 : vector<8x256xf32>
    %41 = arith.divf %39, %40 : vector<8x256xf32>
    %42 = vector.extract_strided_slice %36 {offsets = [0, 128], sizes = [8, 64], strides = [1, 1]} : vector<8x256xf32> to vector<8x64xf32>
    %43 = math.tanh %42 : vector<8x64xf32>
    %44 = vector.extract_strided_slice %41 {offsets = [0, 0], sizes = [8, 64], strides = [1, 1]} : vector<8x256xf32> to vector<8x64xf32>
    %45 = vector.extract_strided_slice %41 {offsets = [0, 64], sizes = [8, 64], strides = [1, 1]} : vector<8x256xf32> to vector<8x64xf32>
    %46 = vector.extract_strided_slice %41 {offsets = [0, 192], sizes = [8, 64], strides = [1, 1]} : vector<8x256xf32> to vector<8x64xf32>
    %47 = arith.mulf %45, %25 : vector<8x64xf32>
    %48 = arith.mulf %44, %43 : vector<8x64xf32>
    %49 = arith.addf %47, %48 : vector<8x64xf32>
    %50 = math.tanh %49 : vector<8x64xf32>
    %51 = arith.mulf %46, %50 : vector<8x64xf32>
    %c2_i32 = arith.constant 2 : i32
    %52 = arith.index_cast %c2_i32 : i32 to index
    %c0_18 = arith.constant 0 : index
    %c0_19 = arith.constant 0 : index
    %53 = vector.load %arg0[%52, %c0_18, %c0_19] : memref<8x8x28xf32, #tpu.memory_space<vmem>>, vector<1x8x28xf32>
    %54 = vector.shape_cast %53 : vector<1x8x28xf32> to vector<8x28xf32>
    %cst_20 = arith.constant dense<0.000000e+00> : vector<8x256xf32>
    %55 = tpu.matmul %54, %0, %cst_20 {dimension_numbers = #tpu.dot_dimension_numbers<[1], [0], [0], [1], [0, 0, 1, 1], [], []>} : vector<8x28xf32>, vector<28x256xf32>, vector<8x256xf32> -> vector<8x256xf32>
    %c0_21 = arith.constant 0 : index
    %c0_22 = arith.constant 0 : index
    %56 = vector.load %arg2[%c0_21, %c0_22] : memref<64x256xf32, #tpu.memory_space<vmem>>, vector<64x256xf32>
    %cst_23 = arith.constant dense<0.000000e+00> : vector<8x256xf32>
    %57 = tpu.matmul %51, %56, %cst_23 {dimension_numbers = #tpu.dot_dimension_numbers<[1], [0], [0], [1], [0, 0, 1, 1], [], []>} : vector<8x64xf32>, vector<64x256xf32>, vector<8x256xf32> -> vector<8x256xf32>
    %58 = arith.addf %55, %57 : vector<8x256xf32>
    %59 = vector.broadcast %1 : vector<1x256xf32> to vector<8x256xf32>
    %60 = arith.addf %58, %59 : vector<8x256xf32>
    %61 = arith.negf %60 : vector<8x256xf32>
    %62 = math.exp %61 : vector<8x256xf32>
    %cst_24 = arith.constant 1.000000e+00 : f32
    %63 = vector.broadcast %cst_24 : f32 to vector<8x256xf32>
    %64 = arith.addf %63, %62 : vector<8x256xf32>
    %65 = arith.divf %63, %64 : vector<8x256xf32>
    %66 = vector.extract_strided_slice %60 {offsets = [0, 128], sizes = [8, 64], strides = [1, 1]} : vector<8x256xf32> to vector<8x64xf32>
    %67 = math.tanh %66 : vector<8x64xf32>
    %68 = vector.extract_strided_slice %65 {offsets = [0, 0], sizes = [8, 64], strides = [1, 1]} : vector<8x256xf32> to vector<8x64xf32>
    %69 = vector.extract_strided_slice %65 {offsets = [0, 64], sizes = [8, 64], strides = [1, 1]} : vector<8x256xf32> to vector<8x64xf32>
    %70 = vector.extract_strided_slice %65 {offsets = [0, 192], sizes = [8, 64], strides = [1, 1]} : vector<8x256xf32> to vector<8x64xf32>
    %71 = arith.mulf %69, %49 : vector<8x64xf32>
    %72 = arith.mulf %68, %67 : vector<8x64xf32>
    %73 = arith.addf %71, %72 : vector<8x64xf32>
    %74 = math.tanh %73 : vector<8x64xf32>
    %75 = arith.mulf %70, %74 : vector<8x64xf32>
    %c3_i32 = arith.constant 3 : i32
    %76 = arith.index_cast %c3_i32 : i32 to index
    %c0_25 = arith.constant 0 : index
    %c0_26 = arith.constant 0 : index
    %77 = vector.load %arg0[%76, %c0_25, %c0_26] : memref<8x8x28xf32, #tpu.memory_space<vmem>>, vector<1x8x28xf32>
    %78 = vector.shape_cast %77 : vector<1x8x28xf32> to vector<8x28xf32>
    %cst_27 = arith.constant dense<0.000000e+00> : vector<8x256xf32>
    %79 = tpu.matmul %78, %0, %cst_27 {dimension_numbers = #tpu.dot_dimension_numbers<[1], [0], [0], [1], [0, 0, 1, 1], [], []>} : vector<8x28xf32>, vector<28x256xf32>, vector<8x256xf32> -> vector<8x256xf32>
    %c0_28 = arith.constant 0 : index
    %c0_29 = arith.constant 0 : index
    %80 = vector.load %arg2[%c0_28, %c0_29] : memref<64x256xf32, #tpu.memory_space<vmem>>, vector<64x256xf32>
    %cst_30 = arith.constant dense<0.000000e+00> : vector<8x256xf32>
    %81 = tpu.matmul %75, %80, %cst_30 {dimension_numbers = #tpu.dot_dimension_numbers<[1], [0], [0], [1], [0, 0, 1, 1], [], []>} : vector<8x64xf32>, vector<64x256xf32>, vector<8x256xf32> -> vector<8x256xf32>
    %82 = arith.addf %79, %81 : vector<8x256xf32>
    %83 = vector.broadcast %1 : vector<1x256xf32> to vector<8x256xf32>
    %84 = arith.addf %82, %83 : vector<8x256xf32>
    %85 = arith.negf %84 : vector<8x256xf32>
    %86 = math.exp %85 : vector<8x256xf32>
    %cst_31 = arith.constant 1.000000e+00 : f32
    %87 = vector.broadcast %cst_31 : f32 to vector<8x256xf32>
    %88 = arith.addf %87, %86 : vector<8x256xf32>
    %89 = arith.divf %87, %88 : vector<8x256xf32>
    %90 = vector.extract_strided_slice %84 {offsets = [0, 128], sizes = [8, 64], strides = [1, 1]} : vector<8x256xf32> to vector<8x64xf32>
    %91 = math.tanh %90 : vector<8x64xf32>
    %92 = vector.extract_strided_slice %89 {offsets = [0, 0], sizes = [8, 64], strides = [1, 1]} : vector<8x256xf32> to vector<8x64xf32>
    %93 = vector.extract_strided_slice %89 {offsets = [0, 64], sizes = [8, 64], strides = [1, 1]} : vector<8x256xf32> to vector<8x64xf32>
    %94 = vector.extract_strided_slice %89 {offsets = [0, 192], sizes = [8, 64], strides = [1, 1]} : vector<8x256xf32> to vector<8x64xf32>
    %95 = arith.mulf %93, %73 : vector<8x64xf32>
    %96 = arith.mulf %92, %91 : vector<8x64xf32>
    %97 = arith.addf %95, %96 : vector<8x64xf32>
    %98 = math.tanh %97 : vector<8x64xf32>
    %99 = arith.mulf %94, %98 : vector<8x64xf32>
    %c4_i32 = arith.constant 4 : i32
    %100 = arith.index_cast %c4_i32 : i32 to index
    %c0_32 = arith.constant 0 : index
    %c0_33 = arith.constant 0 : index
    %101 = vector.load %arg0[%100, %c0_32, %c0_33] : memref<8x8x28xf32, #tpu.memory_space<vmem>>, vector<1x8x28xf32>
    %102 = vector.shape_cast %101 : vector<1x8x28xf32> to vector<8x28xf32>
    %cst_34 = arith.constant dense<0.000000e+00> : vector<8x256xf32>
    %103 = tpu.matmul %102, %0, %cst_34 {dimension_numbers = #tpu.dot_dimension_numbers<[1], [0], [0], [1], [0, 0, 1, 1], [], []>} : vector<8x28xf32>, vector<28x256xf32>, vector<8x256xf32> -> vector<8x256xf32>
    %c0_35 = arith.constant 0 : index
    %c0_36 = arith.constant 0 : index
    %104 = vector.load %arg2[%c0_35, %c0_36] : memref<64x256xf32, #tpu.memory_space<vmem>>, vector<64x256xf32>
    %cst_37 = arith.constant dense<0.000000e+00> : vector<8x256xf32>
    %105 = tpu.matmul %99, %104, %cst_37 {dimension_numbers = #tpu.dot_dimension_numbers<[1], [0], [0], [1], [0, 0, 1, 1], [], []>} : vector<8x64xf32>, vector<64x256xf32>, vector<8x256xf32> -> vector<8x256xf32>
    %106 = arith.addf %103, %105 : vector<8x256xf32>
    %107 = vector.broadcast %1 : vector<1x256xf32> to vector<8x256xf32>
    %108 = arith.addf %106, %107 : vector<8x256xf32>
    %109 = arith.negf %108 : vector<8x256xf32>
    %110 = math.exp %109 : vector<8x256xf32>
    %cst_38 = arith.constant 1.000000e+00 : f32
    %111 = vector.broadcast %cst_38 : f32 to vector<8x256xf32>
    %112 = arith.addf %111, %110 : vector<8x256xf32>
    %113 = arith.divf %111, %112 : vector<8x256xf32>
    %114 = vector.extract_strided_slice %108 {offsets = [0, 128], sizes = [8, 64], strides = [1, 1]} : vector<8x256xf32> to vector<8x64xf32>
    %115 = math.tanh %114 : vector<8x64xf32>
    %116 = vector.extract_strided_slice %113 {offsets = [0, 0], sizes = [8, 64], strides = [1, 1]} : vector<8x256xf32> to vector<8x64xf32>
    %117 = vector.extract_strided_slice %113 {offsets = [0, 64], sizes = [8, 64], strides = [1, 1]} : vector<8x256xf32> to vector<8x64xf32>
    %118 = vector.extract_strided_slice %113 {offsets = [0, 192], sizes = [8, 64], strides = [1, 1]} : vector<8x256xf32> to vector<8x64xf32>
    %119 = arith.mulf %117, %97 : vector<8x64xf32>
    %120 = arith.mulf %116, %115 : vector<8x64xf32>
    %121 = arith.addf %119, %120 : vector<8x64xf32>
    %122 = math.tanh %121 : vector<8x64xf32>
    %123 = arith.mulf %118, %122 : vector<8x64xf32>
    %c5_i32 = arith.constant 5 : i32
    %124 = arith.index_cast %c5_i32 : i32 to index
    %c0_39 = arith.constant 0 : index
    %c0_40 = arith.constant 0 : index
    %125 = vector.load %arg0[%124, %c0_39, %c0_40] : memref<8x8x28xf32, #tpu.memory_space<vmem>>, vector<1x8x28xf32>
    %126 = vector.shape_cast %125 : vector<1x8x28xf32> to vector<8x28xf32>
    %cst_41 = arith.constant dense<0.000000e+00> : vector<8x256xf32>
    %127 = tpu.matmul %126, %0, %cst_41 {dimension_numbers = #tpu.dot_dimension_numbers<[1], [0], [0], [1], [0, 0, 1, 1], [], []>} : vector<8x28xf32>, vector<28x256xf32>, vector<8x256xf32> -> vector<8x256xf32>
    %c0_42 = arith.constant 0 : index
    %c0_43 = arith.constant 0 : index
    %128 = vector.load %arg2[%c0_42, %c0_43] : memref<64x256xf32, #tpu.memory_space<vmem>>, vector<64x256xf32>
    %cst_44 = arith.constant dense<0.000000e+00> : vector<8x256xf32>
    %129 = tpu.matmul %123, %128, %cst_44 {dimension_numbers = #tpu.dot_dimension_numbers<[1], [0], [0], [1], [0, 0, 1, 1], [], []>} : vector<8x64xf32>, vector<64x256xf32>, vector<8x256xf32> -> vector<8x256xf32>
    %130 = arith.addf %127, %129 : vector<8x256xf32>
    %131 = vector.broadcast %1 : vector<1x256xf32> to vector<8x256xf32>
    %132 = arith.addf %130, %131 : vector<8x256xf32>
    %133 = arith.negf %132 : vector<8x256xf32>
    %134 = math.exp %133 : vector<8x256xf32>
    %cst_45 = arith.constant 1.000000e+00 : f32
    %135 = vector.broadcast %cst_45 : f32 to vector<8x256xf32>
    %136 = arith.addf %135, %134 : vector<8x256xf32>
    %137 = arith.divf %135, %136 : vector<8x256xf32>
    %138 = vector.extract_strided_slice %132 {offsets = [0, 128], sizes = [8, 64], strides = [1, 1]} : vector<8x256xf32> to vector<8x64xf32>
    %139 = math.tanh %138 : vector<8x64xf32>
    %140 = vector.extract_strided_slice %137 {offsets = [0, 0], sizes = [8, 64], strides = [1, 1]} : vector<8x256xf32> to vector<8x64xf32>
    %141 = vector.extract_strided_slice %137 {offsets = [0, 64], sizes = [8, 64], strides = [1, 1]} : vector<8x256xf32> to vector<8x64xf32>
    %142 = vector.extract_strided_slice %137 {offsets = [0, 192], sizes = [8, 64], strides = [1, 1]} : vector<8x256xf32> to vector<8x64xf32>
    %143 = arith.mulf %141, %121 : vector<8x64xf32>
    %144 = arith.mulf %140, %139 : vector<8x64xf32>
    %145 = arith.addf %143, %144 : vector<8x64xf32>
    %146 = math.tanh %145 : vector<8x64xf32>
    %147 = arith.mulf %142, %146 : vector<8x64xf32>
    %c6_i32 = arith.constant 6 : i32
    %148 = arith.index_cast %c6_i32 : i32 to index
    %c0_46 = arith.constant 0 : index
    %c0_47 = arith.constant 0 : index
    %149 = vector.load %arg0[%148, %c0_46, %c0_47] : memref<8x8x28xf32, #tpu.memory_space<vmem>>, vector<1x8x28xf32>
    %150 = vector.shape_cast %149 : vector<1x8x28xf32> to vector<8x28xf32>
    %cst_48 = arith.constant dense<0.000000e+00> : vector<8x256xf32>
    %151 = tpu.matmul %150, %0, %cst_48 {dimension_numbers = #tpu.dot_dimension_numbers<[1], [0], [0], [1], [0, 0, 1, 1], [], []>} : vector<8x28xf32>, vector<28x256xf32>, vector<8x256xf32> -> vector<8x256xf32>
    %c0_49 = arith.constant 0 : index
    %c0_50 = arith.constant 0 : index
    %152 = vector.load %arg2[%c0_49, %c0_50] : memref<64x256xf32, #tpu.memory_space<vmem>>, vector<64x256xf32>
    %cst_51 = arith.constant dense<0.000000e+00> : vector<8x256xf32>
    %153 = tpu.matmul %147, %152, %cst_51 {dimension_numbers = #tpu.dot_dimension_numbers<[1], [0], [0], [1], [0, 0, 1, 1], [], []>} : vector<8x64xf32>, vector<64x256xf32>, vector<8x256xf32> -> vector<8x256xf32>
    %154 = arith.addf %151, %153 : vector<8x256xf32>
    %155 = vector.broadcast %1 : vector<1x256xf32> to vector<8x256xf32>
    %156 = arith.addf %154, %155 : vector<8x256xf32>
    %157 = arith.negf %156 : vector<8x256xf32>
    %158 = math.exp %157 : vector<8x256xf32>
    %cst_52 = arith.constant 1.000000e+00 : f32
    %159 = vector.broadcast %cst_52 : f32 to vector<8x256xf32>
    %160 = arith.addf %159, %158 : vector<8x256xf32>
    %161 = arith.divf %159, %160 : vector<8x256xf32>
    %162 = vector.extract_strided_slice %156 {offsets = [0, 128], sizes = [8, 64], strides = [1, 1]} : vector<8x256xf32> to vector<8x64xf32>
    %163 = math.tanh %162 : vector<8x64xf32>
    %164 = vector.extract_strided_slice %161 {offsets = [0, 0], sizes = [8, 64], strides = [1, 1]} : vector<8x256xf32> to vector<8x64xf32>
    %165 = vector.extract_strided_slice %161 {offsets = [0, 64], sizes = [8, 64], strides = [1, 1]} : vector<8x256xf32> to vector<8x64xf32>
    %166 = vector.extract_strided_slice %161 {offsets = [0, 192], sizes = [8, 64], strides = [1, 1]} : vector<8x256xf32> to vector<8x64xf32>
    %167 = arith.mulf %165, %145 : vector<8x64xf32>
    %168 = arith.mulf %164, %163 : vector<8x64xf32>
    %169 = arith.addf %167, %168 : vector<8x64xf32>
    %170 = math.tanh %169 : vector<8x64xf32>
    %171 = arith.mulf %166, %170 : vector<8x64xf32>
    %c7_i32 = arith.constant 7 : i32
    %172 = arith.index_cast %c7_i32 : i32 to index
    %c0_53 = arith.constant 0 : index
    %c0_54 = arith.constant 0 : index
    %173 = vector.load %arg0[%172, %c0_53, %c0_54] : memref<8x8x28xf32, #tpu.memory_space<vmem>>, vector<1x8x28xf32>
    %174 = vector.shape_cast %173 : vector<1x8x28xf32> to vector<8x28xf32>
    %cst_55 = arith.constant dense<0.000000e+00> : vector<8x256xf32>
    %175 = tpu.matmul %174, %0, %cst_55 {dimension_numbers = #tpu.dot_dimension_numbers<[1], [0], [0], [1], [0, 0, 1, 1], [], []>} : vector<8x28xf32>, vector<28x256xf32>, vector<8x256xf32> -> vector<8x256xf32>
    %c0_56 = arith.constant 0 : index
    %c0_57 = arith.constant 0 : index
    %176 = vector.load %arg2[%c0_56, %c0_57] : memref<64x256xf32, #tpu.memory_space<vmem>>, vector<64x256xf32>
    %cst_58 = arith.constant dense<0.000000e+00> : vector<8x256xf32>
    %177 = tpu.matmul %171, %176, %cst_58 {dimension_numbers = #tpu.dot_dimension_numbers<[1], [0], [0], [1], [0, 0, 1, 1], [], []>} : vector<8x64xf32>, vector<64x256xf32>, vector<8x256xf32> -> vector<8x256xf32>
    %178 = arith.addf %175, %177 : vector<8x256xf32>
    %179 = vector.broadcast %1 : vector<1x256xf32> to vector<8x256xf32>
    %180 = arith.addf %178, %179 : vector<8x256xf32>
    %181 = arith.negf %180 : vector<8x256xf32>
    %182 = math.exp %181 : vector<8x256xf32>
    %cst_59 = arith.constant 1.000000e+00 : f32
    %183 = vector.broadcast %cst_59 : f32 to vector<8x256xf32>
    %184 = arith.addf %183, %182 : vector<8x256xf32>
    %185 = arith.divf %183, %184 : vector<8x256xf32>
    %186 = vector.extract_strided_slice %180 {offsets = [0, 128], sizes = [8, 64], strides = [1, 1]} : vector<8x256xf32> to vector<8x64xf32>
    %187 = math.tanh %186 : vector<8x64xf32>
    %188 = vector.extract_strided_slice %185 {offsets = [0, 0], sizes = [8, 64], strides = [1, 1]} : vector<8x256xf32> to vector<8x64xf32>
    %189 = vector.extract_strided_slice %185 {offsets = [0, 64], sizes = [8, 64], strides = [1, 1]} : vector<8x256xf32> to vector<8x64xf32>
    %190 = vector.extract_strided_slice %185 {offsets = [0, 192], sizes = [8, 64], strides = [1, 1]} : vector<8x256xf32> to vector<8x64xf32>
    %191 = arith.mulf %189, %169 : vector<8x64xf32>
    %192 = arith.mulf %188, %187 : vector<8x64xf32>
    %193 = arith.addf %191, %192 : vector<8x64xf32>
    %194 = math.tanh %193 : vector<8x64xf32>
    %195 = arith.mulf %190, %194 : vector<8x64xf32>
    %c8_i32 = arith.constant 8 : i32
    %c0_60 = arith.constant 0 : index
    %c0_61 = arith.constant 0 : index
    %196 = vector.load %arg4[%c0_60, %c0_61] : memref<64x128xf32, #tpu.memory_space<vmem>>, vector<64x128xf32>
    %cst_62 = arith.constant dense<0.000000e+00> : vector<8x128xf32>
    %197 = tpu.matmul %195, %196, %cst_62 {dimension_numbers = #tpu.dot_dimension_numbers<[1], [0], [0], [1], [0, 0, 1, 1], [], []>} : vector<8x64xf32>, vector<64x128xf32>, vector<8x128xf32> -> vector<8x128xf32>
    %c0_63 = arith.constant 0 : index
    %c0_64 = arith.constant 0 : index
    %198 = vector.load %arg5[%c0_63, %c0_64] : memref<1x128xf32, #tpu.memory_space<vmem>>, vector<1x128xf32>
    %199 = vector.broadcast %198 : vector<1x128xf32> to vector<8x128xf32>
    %200 = arith.addf %197, %199 : vector<8x128xf32>
    %c0_65 = arith.constant 0 : index
    %c0_66 = arith.constant 0 : index
    %201 = vector.load %arg6[%c0_65, %c0_66] : memref<8x128xf32, #tpu.memory_space<vmem>>, vector<8x128xf32>
    tpu.vector_store %arg6[%c0_65, %c0_66], %200 {strides = array<i32>} : memref<8x128xf32, #tpu.memory_space<vmem>>, vector<8x128xf32>,
    return
  }
}

</mosaic_0001>

<llo_original>
// kernel: tpu_custom_call.1
$region0: #{tpu_custom_call.1}
  #allocation0 [shape = 'u32[]', space=smem, size = 0x4, offset = 0x4, fixed_abs, tag = 'smem constant byte address 0x4 - core index']
  #allocation1 [shape = 'u32[144,128]{1,0:T(1,128)}', space=vmem, size = 0x12000, scoped, tag = 'internal scratch']
  %s0 = inlined_call_operand.hbm [shape: f32[8,8,28], index: 0, kind: input, shape index: {}]
  %s1 = inlined_call_operand.hbm [shape: f32[28,256], index: 1, kind: input, shape index: {}]
  %s2 = inlined_call_operand.hbm [shape: f32[64,256], index: 2, kind: input, shape index: {}]
  %s3 = inlined_call_operand.vmem [shape: f32[1,256], index: 3, kind: input, shape index: {}]
  %s4 = inlined_call_operand.hbm [shape: f32[64,128], index: 4, kind: input, shape index: {}]
  %s5 = inlined_call_operand.vmem [shape: f32[1,128], index: 5, kind: input, shape index: {}]
  %s6 = inlined_call_operand.hbm [shape: f32[8,128], index: 6, kind: output, shape index: {}]
  %s7 = sld [smem:[#allocation0]]
  $region50: #{tpu_custom_call.1} parent=0
    _
  %s9 = ssub.s32 1, %s7
  %s10 = scalar_select 0, %s9, %s7
  $region1: #{tpu_custom_call.1} parent=0
    #allocation2 [shape = 'u8[32768]{0}', space=vmem, size = 0x8000, scoped, tag = 'input window, operand 0, single buffered']
    #allocation3 [shape = 's32[1]{0}', space=sflag, size = 0x4, scoped, tag = 'scoped memory for tpu_custom_call.1']
    #allocation4 [shape = 's32[1]{0}', space=sflag, size = 0x4, scoped, tag = 'scoped memory for tpu_custom_call.1']
    #allocation5 [shape = 'u8[32768]{0}', space=vmem, size = 0x8000, scoped, tag = 'input window, operand 1, single buffered']
    #allocation6 [shape = 's32[1]{0}', space=sflag, size = 0x4, scoped, tag = 'scoped memory for tpu_custom_call.1']
    #allocation7 [shape = 'u8[65536]{0}', space=vmem, size = 0x10000, scoped, tag = 'input window, operand 2, single buffered']
    #allocation8 [shape = 'u8[32768]{0}', space=vmem, size = 0x8000, scoped, tag = 'input window, operand 4, single buffered']
    #allocation9 [shape = 's32[1]{0}', space=sflag, size = 0x4, scoped, tag = 'scoped memory for tpu_custom_call.1']
    #allocation10 [shape = 'u8[4096]{0}', space=vmem, size = 0x1000, scoped, tag = 'output window, operand 0, single buffered']
    %11 = vsyncpa [#allocation3], 0
    %12 = vsyncpa [#allocation6], 0
    %13 = vsyncpa [#allocation9], 0
    %14 = vsyncpa [#allocation4], 0
    // Predicated region
    $region2: #{tpu_custom_call.1} parent=1 // pred_check
      _
    $region3: #{tpu_custom_call.1} parent=1 // pred_check_branch
      %16 = sbr.rel (0) target = $region5
    $region4: #{tpu_custom_call.1} parent=1 // pred_region
      %s18 = ssub.s32 1024, 1024
      %19 = vsyncadd [#allocation3], %s18
      %s20 = sshll.u32 [#allocation2], 4
      %s21 = int_to_ptr.vmem [resolvable:$true] %s20
      %26 = dma.hbm_to_vmem [thread:$0]  %s0, 1024, %s21, [#allocation3], 128, 128, 8
    $region5: #{tpu_custom_call.1} parent=1 // pred_fallthru
      _
    // Predicated region
    $region6: #{tpu_custom_call.1} parent=1 // pred_check
      _
    $region7: #{tpu_custom_call.1} parent=1 // pred_check_branch
      %28 = sbr.rel (0) target = $region9
    $region8: #{tpu_custom_call.1} parent=1 // pred_region
      %s30 = ssub.s32 1024, 1024
      %31 = vsyncadd [#allocation6], %s30
      %s32 = sshll.u32 [#allocation5], 4
      %s33 = int_to_ptr.vmem [resolvable:$true] %s32
      %38 = dma.hbm_to_vmem [thread:$0]  %s1, 1024, %s33, [#allocation6], 256, 256, 16
    $region9: #{tpu_custom_call.1} parent=1 // pred_fallthru
      _
    // Predicated region
    $region10: #{tpu_custom_call.1} parent=1 // pred_check
      _
    $region11: #{tpu_custom_call.1} parent=1 // pred_check_branch
      %40 = sbr.rel (0) target = $region13
    $region12: #{tpu_custom_call.1} parent=1 // pred_region
      %s42 = ssub.s32 2048, 2048
      %43 = vsyncadd [#allocation6], %s42
      %s44 = sshll.u32 [#allocation7], 4
      %s45 = int_to_ptr.vmem [resolvable:$true] %s44
      %50 = dma.hbm_to_vmem [thread:$0]  %s2, 2048, %s45, [#allocation6], 256, 256, 16
    $region13: #{tpu_custom_call.1} parent=1 // pred_fallthru
      _
    // Predicated region
    $region14: #{tpu_custom_call.1} parent=1 // pred_check
      _
    $region15: #{tpu_custom_call.1} parent=1 // pred_check_branch
      %52 = sbr.rel (0) target = $region17
    $region16: #{tpu_custom_call.1} parent=1 // pred_region
      _
    $region17: #{tpu_custom_call.1} parent=1 // pred_fallthru
      _
    // Predicated region
    $region18: #{tpu_custom_call.1} parent=1 // pred_check
      _
    $region19: #{tpu_custom_call.1} parent=1 // pred_check_branch
      %54 = sbr.rel (0) target = $region21
    $region20: #{tpu_custom_call.1} parent=1 // pred_region
      %s56 = ssub.s32 1024, 1024
      %57 = vsyncadd [#allocation9], %s56
      %s58 = sshll.u32 [#allocation8], 4
      %s59 = int_to_ptr.vmem [resolvable:$true] %s58
      %64 = dma.hbm_to_vmem [thread:$0]  %s4, 1024, %s59, [#allocation9], 128, 128, 8
    $region21: #{tpu_custom_call.1} parent=1 // pred_fallthru
      _
    // Predicated region
    $region22: #{tpu_custom_call.1} parent=1 // pred_check
      _
    $region23: #{tpu_custom_call.1} parent=1 // pred_check_branch
      %66 = sbr.rel (0) target = $region25
    $region24: #{tpu_custom_call.1} parent=1 // pred_region
      _
    $region25: #{tpu_custom_call.1} parent=1 // pred_fallthru
      _
    // Predicated region
    $region26: #{tpu_custom_call.1} parent=1 // pred_check
      _
    $region27: #{tpu_custom_call.1} parent=1 // pred_check_branch
      %68 = sbr.rel (0) target = $region29
    $region28: #{tpu_custom_call.1} parent=1 // pred_region
      %69 = dma.done [#allocation3], 1024
    $region29: #{tpu_custom_call.1} parent=1 // pred_fallthru
      _
    // Predicated region
    $region30: #{tpu_custom_call.1} parent=1 // pred_check
      _
    $region31: #{tpu_custom_call.1} parent=1 // pred_check_branch
      %71 = sbr.rel (0) target = $region33
    $region32: #{tpu_custom_call.1} parent=1 // pred_region
      %72 = dma.done [#allocation6], 1024
    $region33: #{tpu_custom_call.1} parent=1 // pred_fallthru
      _
    // Predicated region
    $region34: #{tpu_custom_call.1} parent=1 // pred_check
      _
    $region35: #{tpu_custom_call.1} parent=1 // pred_check_branch
      %74 = sbr.rel (0) target = $region37
    $region36: #{tpu_custom_call.1} parent=1 // pred_region
      %75 = dma.done [#allocation6], 2048
    $region37: #{tpu_custom_call.1} parent=1 // pred_fallthru
      _
    // Predicated region
    $region38: #{tpu_custom_call.1} parent=1 // pred_check
      _
    $region39: #{tpu_custom_call.1} parent=1 // pred_check_branch
      %77 = sbr.rel (0) target = $region41
    $region40: #{tpu_custom_call.1} parent=1 // pred_region
      %78 = dma.done [#allocation9], 1024
    $region41: #{tpu_custom_call.1} parent=1 // pred_fallthru
      _
    %v79 = vld [vmem:[#allocation5] sm:$0xff]
    %v80 = vld [vmem:[#allocation5 + $0x8] sm:$0xff]
    %v81 = vld [vmem:[#allocation5 + $0x10] sm:$0xff]
    %v82 = vld [vmem:[#allocation5 + $0x18] sm:$0xff]
    %v83 = vld [vmem:[#allocation5 + $0x20] sm:$0xff]
    %v84 = vld [vmem:[#allocation5 + $0x28] sm:$0xff]
    %v85 = vld [vmem:[#allocation5 + $0x30] sm:$0xf]
    %v86 = vld [vmem:[#allocation5 + $0x38] sm:$0xf]
    %v87 = vld [vmem:[%s3] sm:$0x3]
    %v88 = vld [vmem:[#allocation2] sm:$0xff]
    %v89 = vld [vmem:[#allocation7] sm:$0xff]
    %v90 = vld [vmem:[#allocation7 + $0x8] sm:$0xff]
    %v91 = vld [vmem:[#allocation7 + $0x10] sm:$0xff]
    %v92 = vld [vmem:[#allocation7 + $0x18] sm:$0xff]
    %v93 = vld [vmem:[#allocation7 + $0x20] sm:$0xff]
    %v94 = vld [vmem:[#allocation7 + $0x28] sm:$0xff]
    %v95 = vld [vmem:[#allocation7 + $0x30] sm:$0xff]
    %v96 = vld [vmem:[#allocation7 + $0x38] sm:$0xff]
    %v97 = vld [vmem:[#allocation7 + $0x40] sm:$0xff]
    %v98 = vld [vmem:[#allocation7 + $0x48] sm:$0xff]
    %v99 = vld [vmem:[#allocation7 + $0x50] sm:$0xff]
    %v100 = vld [vmem:[#allocation7 + $0x58] sm:$0xff]
    %v101 = vld [vmem:[#allocation7 + $0x60] sm:$0xff]
    %v102 = vld [vmem:[#allocation7 + $0x68] sm:$0xff]
    %v103 = vld [vmem:[#allocation7 + $0x70] sm:$0xff]
    %v104 = vld [vmem:[#allocation7 + $0x78] sm:$0xff]
    %vm105 = vcmask 523264
    %v107 = vsel %vm105, 0.0, 0
    %109 = vmatprep.subr.mxu0 %v90
    %110 = vmatpush1.msra.mxu0 %v89
    %111 = vmatprep.subr.mxu0 %v92
    %112 = vmatpush1.msra.mxu0 %v91
    %113 = vmatprep.subr.mxu0 %v94
    %114 = vmatpush1.msra.mxu0 %v93
    %115 = vmatprep.subr.mxu0 %v96
    %116 = vmatpush1.msra.mxu0 %v95
    %117 = vmatprep.subr.mxu0 %v98
    %118 = vmatpush1.msra.mxu0 %v97
    %119 = vmatprep.subr.mxu0 %v100
    %120 = vmatpush1.msra.mxu0 %v99
    %121 = vmatprep.subr.mxu0 %v102
    %122 = vmatpush1.msra.mxu0 %v101
    %123 = vmatprep.subr.mxu0 %v104
    %124 = vmatpush1.msra.mxu0 %v103
    %125 = vmatprep.subr.mxu0 0.0
    %126 = vmatpush1.msra.mxu0 0.0
    %127 = vmatprep.subr.mxu0 0.0
    %128 = vmatpush1.msra.mxu0 0.0
    %129 = vmatprep.subr.mxu0 0.0
    %130 = vmatpush1.msra.mxu0 0.0
    %131 = vmatprep.subr.mxu0 0.0
    %132 = vmatpush1.msra.mxu0 0.0
    %133 = vmatprep.subr.mxu0 0.0
    %134 = vmatpush1.msra.mxu0 0.0
    %135 = vmatprep.subr.mxu0 0.0
    %136 = vmatpush1.msra.mxu0 0.0
    %137 = vmatprep.subr.mxu0 0.0
    %138 = vmatpush1.msra.mxu0 0.0
    %139 = vmatprep.subr.mxu0 0.0
    %140 = vmatpush1.msra.mxu0 0.0
    %141 = vmatprep.subr.mxu0 0.0
    %142 = vmatpush1.msra.mxu0 0.0
    %143 = vmatprep.subr.mxu0 0.0
    %144 = vmatpush1.msra.mxu0 0.0
    %145 = vmatprep.subr.mxu0 0.0
    %146 = vmatpush1.msra.mxu0 0.0
    %147 = vmatprep.subr.mxu0 0.0
    %148 = vmatpush1.msra.mxu0 0.0
    %149 = vmatprep.subr.mxu0 0.0
    %150 = vmatpush1.msra.mxu0 0.0
    %151 = vmatprep.subr.mxu0 0.0
    %152 = vmatpush1.msra.mxu0 0.0
    %153 = vmatprep.subr.mxu0 0.0
    %154 = vmatpush1.msra.mxu0 0.0
    %155 = vmatprep.subr.mxu0 0.0
    %156 = vmatpush1.msra.mxu0 0.0
    %157 = vmatprep.subr.mxu0 0.0
    %158 = vmatpush1.msra.mxu0 0.0
    %159 = vmatprep.subr.mxu0 0.0
    %160 = vmatpush1.msra.mxu0 0.0
    %161 = vmatprep.subr.mxu0 0.0
    %162 = vmatpush1.msra.mxu0 0.0
    %163 = vmatprep.subr.mxu0 0.0
    %164 = vmatpush1.msra.mxu0 0.0
    %165 = vmatprep.subr.mxu0 0.0
    %166 = vmatpush1.msra.mxu0 0.0
    %167 = vmatprep.subr.mxu0 0.0
    %168 = vmatpush1.msra.mxu0 0.0
    %169 = vmatprep.subr.mxu0 0.0
    %170 = vmatpush1.msra.mxu0 0.0
    %171 = vmatprep.subr.mxu0 0.0
    %172 = vmatpush1.msra.mxu0 0.0
    %173 = vmatprep.mubr.f32.mxu0 0.0
    %174 = vmatmul.mubr.f32.gmra.mrb[0].mxu0 %v107
    %v175 = vpop.f32.mrb[0].mxu0
    %v176 = vadd.f32 0.0, %v175
    %v177 = vpop.f32.mrb[0].mxu0
    %v178 = vadd.f32 0.0, %v177
    %179 = vdwg.mxu0
    %vm180 = vcmask 228352
    %v182 = vsel %vm180, %v88, 0
    %vm184 = vcmask 1043456
    %v186 = vsel %vm184, %v85, 0
    %v189 = vsel %vm184, %v86, 0
    %191 = vmatprep.subr.mxu0 %v80
    %192 = vmatpush1.msra.mxu0 %v79
    %193 = vmatprep.subr.mxu0 %v82
    %194 = vmatpush1.msra.mxu0 %v81
    %195 = vmatprep.subr.mxu0 %v84
    %196 = vmatpush1.msra.mxu0 %v83
    %197 = vmatprep.subr.mxu0 %v189
    %198 = vmatpush1.msra.mxu0 %v186
    %199 = vmatprep.subr.mxu0 0.0
    %200 = vmatpush1.msra.mxu0 0.0
    %201 = vmatprep.subr.mxu0 0.0
    %202 = vmatpush1.msra.mxu0 0.0
    %203 = vmatprep.subr.mxu0 0.0
    %204 = vmatpush1.msra.mxu0 0.0
    %205 = vmatprep.subr.mxu0 0.0
    %206 = vmatpush1.msra.mxu0 0.0
    %207 = vmatprep.subr.mxu0 0.0
    %208 = vmatpush1.msra.mxu0 0.0
    %209 = vmatprep.subr.mxu0 0.0
    %210 = vmatpush1.msra.mxu0 0.0
    %211 = vmatprep.subr.mxu0 0.0
    %212 = vmatpush1.msra.mxu0 0.0
    %213 = vmatprep.subr.mxu0 0.0
    %214 = vmatpush1.msra.mxu0 0.0
    %215 = vmatprep.subr.mxu0 0.0
    %216 = vmatpush1.msra.mxu0 0.0
    %217 = vmatprep.subr.mxu0 0.0
    %218 = vmatpush1.msra.mxu0 0.0
    %219 = vmatprep.subr.mxu0 0.0
    %220 = vmatpush1.msra.mxu0 0.0
    %221 = vmatprep.subr.mxu0 0.0
    %222 = vmatpush1.msra.mxu0 0.0
    %223 = vmatprep.subr.mxu0 0.0
    %224 = vmatpush1.msra.mxu0 0.0
    %225 = vmatprep.subr.mxu0 0.0
    %226 = vmatpush1.msra.mxu0 0.0
    %227 = vmatprep.subr.mxu0 0.0
    %228 = vmatpush1.msra.mxu0 0.0
    %229 = vmatprep.subr.mxu0 0.0
    %230 = vmatpush1.msra.mxu0 0.0
    %231 = vmatprep.subr.mxu0 0.0
    %232 = vmatpush1.msra.mxu0 0.0
    %233 = vmatprep.subr.mxu0 0.0
    %234 = vmatpush1.msra.mxu0 0.0
    %235 = vmatprep.subr.mxu0 0.0
    %236 = vmatpush1.msra.mxu0 0.0
    %237 = vmatprep.subr.mxu0 0.0
    %238 = vmatpush1.msra.mxu0 0.0
    %239 = vmatprep.subr.mxu0 0.0
    %240 = vmatpush1.msra.mxu0 0.0
    %241 = vmatprep.subr.mxu0 0.0
    %242 = vmatpush1.msra.mxu0 0.0
    %243 = vmatprep.subr.mxu0 0.0
    %244 = vmatpush1.msra.mxu0 0.0
    %245 = vmatprep.subr.mxu0 0.0
    %246 = vmatpush1.msra.mxu0 0.0
    %247 = vmatprep.subr.mxu0 0.0
    %248 = vmatpush1.msra.mxu0 0.0
    %249 = vmatprep.subr.mxu0 0.0
    %250 = vmatpush1.msra.mxu0 0.0
    %251 = vmatprep.subr.mxu0 0.0
    %252 = vmatpush1.msra.mxu0 0.0
    %253 = vmatprep.subr.mxu0 0.0
    %254 = vmatpush1.msra.mxu0 0.0
    %255 = vmatprep.mubr.f32.mxu0 0.0
    %256 = vmatmul.mubr.f32.gmra.mrb[0].mxu0 %v182
    %v257 = vpop.f32.mrb[0].mxu0
    %v258 = vadd.f32 %v176, %v257
    %v259 = vpop.f32.mrb[0].mxu0
    %v260 = vadd.f32 %v178, %v259
    %261 = vdwg.mxu0
    %v263 = vlaneseq
    %v264 = vshrl.u32 %v263, 7
    %v265 = vsub.s32 0, %v264
    %v266 = vrot.slane %v87, %v265
    %v267 = vlaneseq
    %v268 = vshrl.u32 %v267, 7
    %v269 = vsub.s32 1, %v268
    %v270 = vrot.slane %v87, %v269
    %v273 = vadd.f32 %v258, %v266
    %v274 = vadd.f32 %v260, %v270
    %v275 = vxor.u32 %v273, 2147483648
    %v276 = vxor.u32 %v274, 2147483648
    %v277 = vmul.f32 %v275, 1.442695
    %v278 = vpow.pop %v277
    %v279 = vmul.f32 %v276, 1.442695
    %v280 = vpow.pop %v279
    %v281 = vadd.f32 %v278, 1.0
    %v282 = vadd.f32 %v280, 1.0
    %v283 = vrcp.pop %v281
    %v284 = vmul.f32 1.0, %v283
    %v285 = vrcp.pop %v282
    %v286 = vmul.f32 1.0, %v285
    %v287 = vtanh.pop %v274
    %v288 = vmul.f32 %v284, 0.0
    %v289 = vmul.f32 %v284, %v287
    %291 = vrot.lane.b32.xlu0 %v289, 64
    %v292 = vpop.permute.xlu0 %291
    %v294 = vadd.f32 %v288, %v292
    %v295 = vtanh.pop %v294
    %v296 = vmul.f32 %v286, %v295
    %s297 = scalar_lea.vmem [#allocation2], 8
    %v298 = vld [vmem:[%s297] sm:$0xff]
    %300 = vrot.lane.b32.xlu0 %v296, 64
    %v301 = vpop.permute.xlu0 %300
    %v302 = vsel %vm105, %v301, 0
    %304 = vmatprep.subr.mxu0 %v90
    %305 = vmatpush1.msra.mxu0 %v89
    %306 = vmatprep.subr.mxu0 %v92
    %307 = vmatpush1.msra.mxu0 %v91
    %308 = vmatprep.subr.mxu0 %v94
    %309 = vmatpush1.msra.mxu0 %v93
    %310 = vmatprep.subr.mxu0 %v96
    %311 = vmatpush1.msra.mxu0 %v95
    %312 = vmatprep.subr.mxu0 %v98
    %313 = vmatpush1.msra.mxu0 %v97
    %314 = vmatprep.subr.mxu0 %v100
    %315 = vmatpush1.msra.mxu0 %v99
    %316 = vmatprep.subr.mxu0 %v102
    %317 = vmatpush1.msra.mxu0 %v101
    %318 = vmatprep.subr.mxu0 %v104
    %319 = vmatpush1.msra.mxu0 %v103
    %320 = vmatprep.subr.mxu0 0.0
    %321 = vmatpush1.msra.mxu0 0.0
    %322 = vmatprep.subr.mxu0 0.0
    %323 = vmatpush1.msra.mxu0 0.0
    %324 = vmatprep.subr.mxu0 0.0
    %325 = vmatpush1.msra.mxu0 0.0
    %326 = vmatprep.subr.mxu0 0.0
    %327 = vmatpush1.msra.mxu0 0.0
    %328 = vmatprep.subr.mxu0 0.0
    %329 = vmatpush1.msra.mxu0 0.0
    %330 = vmatprep.subr.mxu0 0.0
    %331 = vmatpush1.msra.mxu0 0.0
    %332 = vmatprep.subr.mxu0 0.0
    %333 = vmatpush1.msra.mxu0 0.0
    %334 = vmatprep.subr.mxu0 0.0
    %335 = vmatpush1.msra.mxu0 0.0
    %336 = vmatprep.subr.mxu0 0.0
    %337 = vmatpush1.msra.mxu0 0.0
    %338 = vmatprep.subr.mxu0 0.0
    %339 = vmatpush1.msra.mxu0 0.0
    %340 = vmatprep.subr.mxu0 0.0
    %341 = vmatpush1.msra.mxu0 0.0
    %342 = vmatprep.subr.mxu0 0.0
    %343 = vmatpush1.msra.mxu0 0.0
    %344 = vmatprep.subr.mxu0 0.0
    %345 = vmatpush1.msra.mxu0 0.0
    %346 = vmatprep.subr.mxu0 0.0
    %347 = vmatpush1.msra.mxu0 0.0
    %348 = vmatprep.subr.mxu0 0.0
    %349 = vmatpush1.msra.mxu0 0.0
    %350 = vmatprep.subr.mxu0 0.0
    %351 = vmatpush1.msra.mxu0 0.0
    %352 = vmatprep.subr.mxu0 0.0
    %353 = vmatpush1.msra.mxu0 0.0
    %354 = vmatprep.subr.mxu0 0.0
    %355 = vmatpush1.msra.mxu0 0.0
    %356 = vmatprep.subr.mxu0 0.0
    %357 = vmatpush1.msra.mxu0 0.0
    %358 = vmatprep.subr.mxu0 0.0
    %359 = vmatpush1.msra.mxu0 0.0
    %360 = vmatprep.subr.mxu0 0.0
    %361 = vmatpush1.msra.mxu0 0.0
    %362 = vmatprep.subr.mxu0 0.0
    %363 = vmatpush1.msra.mxu0 0.0
    %364 = vmatprep.subr.mxu0 0.0
    %365 = vmatpush1.msra.mxu0 0.0
    %366 = vmatprep.subr.mxu0 0.0
    %367 = vmatpush1.msra.mxu0 0.0
    %368 = vmatprep.mubr.f32.mxu0 0.0
    %369 = vmatmul.mubr.f32.gmra.mrb[0].mxu0 %v302
    %v370 = vpop.f32.mrb[0].mxu0
    %v371 = vadd.f32 0.0, %v370
    %v372 = vpop.f32.mrb[0].mxu0
    %v373 = vadd.f32 0.0, %v372
    %374 = vdwg.mxu0
    %v376 = vsel %vm180, %v298, 0
    %378 = vmatprep.subr.mxu0 %v80
    %379 = vmatpush1.msra.mxu0 %v79
    %380 = vmatprep.subr.mxu0 %v82
    %381 = vmatpush1.msra.mxu0 %v81
    %382 = vmatprep.subr.mxu0 %v84
    %383 = vmatpush1.msra.mxu0 %v83
    %384 = vmatprep.subr.mxu0 %v189
    %385 = vmatpush1.msra.mxu0 %v186
    %386 = vmatprep.subr.mxu0 0.0
    %387 = vmatpush1.msra.mxu0 0.0
    %388 = vmatprep.subr.mxu0 0.0
    %389 = vmatpush1.msra.mxu0 0.0
    %390 = vmatprep.subr.mxu0 0.0
    %391 = vmatpush1.msra.mxu0 0.0
    %392 = vmatprep.subr.mxu0 0.0
    %393 = vmatpush1.msra.mxu0 0.0
    %394 = vmatprep.subr.mxu0 0.0
    %395 = vmatpush1.msra.mxu0 0.0
    %396 = vmatprep.subr.mxu0 0.0
    %397 = vmatpush1.msra.mxu0 0.0
    %398 = vmatprep.subr.mxu0 0.0
    %399 = vmatpush1.msra.mxu0 0.0
    %400 = vmatprep.subr.mxu0 0.0
    %401 = vmatpush1.msra.mxu0 0.0
    %402 = vmatprep.subr.mxu0 0.0
    %403 = vmatpush1.msra.mxu0 0.0
    %404 = vmatprep.subr.mxu0 0.0
    %405 = vmatpush1.msra.mxu0 0.0
    %406 = vmatprep.subr.mxu0 0.0
    %407 = vmatpush1.msra.mxu0 0.0
    %408 = vmatprep.subr.mxu0 0.0
    %409 = vmatpush1.msra.mxu0 0.0
    %410 = vmatprep.subr.mxu0 0.0
    %411 = vmatpush1.msra.mxu0 0.0
    %412 = vmatprep.subr.mxu0 0.0
    %413 = vmatpush1.msra.mxu0 0.0
    %414 = vmatprep.subr.mxu0 0.0
    %415 = vmatpush1.msra.mxu0 0.0
    %416 = vmatprep.subr.mxu0 0.0
    %417 = vmatpush1.msra.mxu0 0.0
    %418 = vmatprep.subr.mxu0 0.0
    %419 = vmatpush1.msra.mxu0 0.0
    %420 = vmatprep.subr.mxu0 0.0
    %421 = vmatpush1.msra.mxu0 0.0
    %422 = vmatprep.subr.mxu0 0.0
    %423 = vmatpush1.msra.mxu0 0.0
    %424 = vmatprep.subr.mxu0 0.0
    %425 = vmatpush1.msra.mxu0 0.0
    %426 = vmatprep.subr.mxu0 0.0
    %427 = vmatpush1.msra.mxu0 0.0
    %428 = vmatprep.subr.mxu0 0.0
    %429 = vmatpush1.msra.mxu0 0.0
    %430 = vmatprep.subr.mxu0 0.0
    %431 = vmatpush1.msra.mxu0 0.0
    %432 = vmatprep.subr.mxu0 0.0
    %433 = vmatpush1.msra.mxu0 0.0
    %434 = vmatprep.subr.mxu0 0.0
    %435 = vmatpush1.msra.mxu0 0.0
    %436 = vmatprep.subr.mxu0 0.0
    %437 = vmatpush1.msra.mxu0 0.0
    %438 = vmatprep.subr.mxu0 0.0
    %439 = vmatpush1.msra.mxu0 0.0
    %440 = vmatprep.subr.mxu0 0.0
    %441 = vmatpush1.msra.mxu0 0.0
    %442 = vmatprep.mubr.f32.mxu0 0.0
    %443 = vmatmul.mubr.f32.gmra.mrb[0].mxu0 %v376
    %v444 = vpop.f32.mrb[0].mxu0
    %v445 = vadd.f32 %v371, %v444
    %v446 = vpop.f32.mrb[0].mxu0
    %v447 = vadd.f32 %v373, %v446
    %448 = vdwg.mxu0
    %v449 = vadd.f32 %v445, %v266
    %v450 = vadd.f32 %v447, %v270
    %v451 = vxor.u32 %v449, 2147483648
    %v452 = vxor.u32 %v450, 2147483648
    %v453 = vmul.f32 %v451, 1.442695
    %v454 = vpow.pop %v453
    %v455 = vmul.f32 %v452, 1.442695
    %v456 = vpow.pop %v455
    %v457 = vadd.f32 %v454, 1.0
    %v458 = vadd.f32 %v456, 1.0
    %v459 = vrcp.pop %v457
    %v460 = vmul.f32 1.0, %v459
    %v461 = vrcp.pop %v458
    %v462 = vmul.f32 1.0, %v461
    %v463 = vtanh.pop %v450
    %v464 = vmul.f32 %v460, %v294
    %v465 = vmul.f32 %v460, %v463
    %467 = vrot.lane.b32.xlu0 %v465, 64
    %v468 = vpop.permute.xlu0 %467
    %v470 = vadd.f32 %v464, %v468
    %v471 = vtanh.pop %v470
    %v472 = vmul.f32 %v462, %v471
    %s473 = scalar_lea.vmem [#allocation2], 16
    %v474 = vld [vmem:[%s473] sm:$0xff]
    %476 = vrot.lane.b32.xlu0 %v472, 64
    %v477 = vpop.permute.xlu0 %476
    %v478 = vsel %vm105, %v477, 0
    %480 = vmatprep.subr.mxu0 %v90
    %481 = vmatpush1.msra.mxu0 %v89
    %482 = vmatprep.subr.mxu0 %v92
    %483 = vmatpush1.msra.mxu0 %v91
    %484 = vmatprep.subr.mxu0 %v94
    %485 = vmatpush1.msra.mxu0 %v93
    %486 = vmatprep.subr.mxu0 %v96
    %487 = vmatpush1.msra.mxu0 %v95
    %488 = vmatprep.subr.mxu0 %v98
    %489 = vmatpush1.msra.mxu0 %v97
    %490 = vmatprep.subr.mxu0 %v100
    %491 = vmatpush1.msra.mxu0 %v99
    %492 = vmatprep.subr.mxu0 %v102
    %493 = vmatpush1.msra.mxu0 %v101
    %494 = vmatprep.subr.mxu0 %v104
    %495 = vmatpush1.msra.mxu0 %v103
    %496 = vmatprep.subr.mxu0 0.0
    %497 = vmatpush1.msra.mxu0 0.0
    %498 = vmatprep.subr.mxu0 0.0
    %499 = vmatpush1.msra.mxu0 0.0
    %500 = vmatprep.subr.mxu0 0.0
    %501 = vmatpush1.msra.mxu0 0.0
    %502 = vmatprep.subr.mxu0 0.0
    %503 = vmatpush1.msra.mxu0 0.0
    %504 = vmatprep.subr.mxu0 0.0
    %505 = vmatpush1.msra.mxu0 0.0
    %506 = vmatprep.subr.mxu0 0.0
    %507 = vmatpush1.msra.mxu0 0.0
    %508 = vmatprep.subr.mxu0 0.0
    %509 = vmatpush1.msra.mxu0 0.0
    %510 = vmatprep.subr.mxu0 0.0
    %511 = vmatpush1.msra.mxu0 0.0
    %512 = vmatprep.subr.mxu0 0.0
    %513 = vmatpush1.msra.mxu0 0.0
    %514 = vmatprep.subr.mxu0 0.0
    %515 = vmatpush1.msra.mxu0 0.0
    %516 = vmatprep.subr.mxu0 0.0
    %517 = vmatpush1.msra.mxu0 0.0
    %518 = vmatprep.subr.mxu0 0.0
    %519 = vmatpush1.msra.mxu0 0.0
    %520 = vmatprep.subr.mxu0 0.0
    %521 = vmatpush1.msra.mxu0 0.0
    %522 = vmatprep.subr.mxu0 0.0
    %523 = vmatpush1.msra.mxu0 0.0
    %524 = vmatprep.subr.mxu0 0.0
    %525 = vmatpush1.msra.mxu0 0.0
    %526 = vmatprep.subr.mxu0 0.0
    %527 = vmatpush1.msra.mxu0 0.0
    %528 = vmatprep.subr.mxu0 0.0
    %529 = vmatpush1.msra.mxu0 0.0
    %530 = vmatprep.subr.mxu0 0.0
    %531 = vmatpush1.msra.mxu0 0.0
    %532 = vmatprep.subr.mxu0 0.0
    %533 = vmatpush1.msra.mxu0 0.0
    %534 = vmatprep.subr.mxu0 0.0
    %535 = vmatpush1.msra.mxu0 0.0
    %536 = vmatprep.subr.mxu0 0.0
    %537 = vmatpush1.msra.mxu0 0.0
    %538 = vmatprep.subr.mxu0 0.0
    %539 = vmatpush1.msra.mxu0 0.0
    %540 = vmatprep.subr.mxu0 0.0
    %541 = vmatpush1.msra.mxu0 0.0
    %542 = vmatprep.subr.mxu0 0.0
    %543 = vmatpush1.msra.mxu0 0.0
    %544 = vmatprep.mubr.f32.mxu0 0.0
    %545 = vmatmul.mubr.f32.gmra.mrb[0].mxu0 %v478
    %v546 = vpop.f32.mrb[0].mxu0
    %v547 = vadd.f32 0.0, %v546
    %v548 = vpop.f32.mrb[0].mxu0
    %v549 = vadd.f32 0.0, %v548
    %550 = vdwg.mxu0
    %v552 = vsel %vm180, %v474, 0
    %554 = vmatprep.subr.mxu0 %v80
    %555 = vmatpush1.msra.mxu0 %v79
    %556 = vmatprep.subr.mxu0 %v82
    %557 = vmatpush1.msra.mxu0 %v81
    %558 = vmatprep.subr.mxu0 %v84
    %559 = vmatpush1.msra.mxu0 %v83
    %560 = vmatprep.subr.mxu0 %v189
    %561 = vmatpush1.msra.mxu0 %v186
    %562 = vmatprep.subr.mxu0 0.0
    %563 = vmatpush1.msra.mxu0 0.0
    %564 = vmatprep.subr.mxu0 0.0
    %565 = vmatpush1.msra.mxu0 0.0
    %566 = vmatprep.subr.mxu0 0.0
    %567 = vmatpush1.msra.mxu0 0.0
    %568 = vmatprep.subr.mxu0 0.0
    %569 = vmatpush1.msra.mxu0 0.0
    %570 = vmatprep.subr.mxu0 0.0
    %571 = vmatpush1.msra.mxu0 0.0
    %572 = vmatprep.subr.mxu0 0.0
    %573 = vmatpush1.msra.mxu0 0.0
    %574 = vmatprep.subr.mxu0 0.0
    %575 = vmatpush1.msra.mxu0 0.0
    %576 = vmatprep.subr.mxu0 0.0
    %577 = vmatpush1.msra.mxu0 0.0
    %578 = vmatprep.subr.mxu0 0.0
    %579 = vmatpush1.msra.mxu0 0.0
    %580 = vmatprep.subr.mxu0 0.0
    %581 = vmatpush1.msra.mxu0 0.0
    %582 = vmatprep.subr.mxu0 0.0
    %583 = vmatpush1.msra.mxu0 0.0
    %584 = vmatprep.subr.mxu0 0.0
    %585 = vmatpush1.msra.mxu0 0.0
    %586 = vmatprep.subr.mxu0 0.0
    %587 = vmatpush1.msra.mxu0 0.0
    %588 = vmatprep.subr.mxu0 0.0
    %589 = vmatpush1.msra.mxu0 0.0
    %590 = vmatprep.subr.mxu0 0.0
    %591 = vmatpush1.msra.mxu0 0.0
    %592 = vmatprep.subr.mxu0 0.0
    %593 = vmatpush1.msra.mxu0 0.0
    %594 = vmatprep.subr.mxu0 0.0
    %595 = vmatpush1.msra.mxu0 0.0
    %596 = vmatprep.subr.mxu0 0.0
    %597 = vmatpush1.msra.mxu0 0.0
    %598 = vmatprep.subr.mxu0 0.0
    %599 = vmatpush1.msra.mxu0 0.0
    %600 = vmatprep.subr.mxu0 0.0
    %601 = vmatpush1.msra.mxu0 0.0
    %602 = vmatprep.subr.mxu0 0.0
    %603 = vmatpush1.msra.mxu0 0.0
    %604 = vmatprep.subr.mxu0 0.0
    %605 = vmatpush1.msra.mxu0 0.0
    %606 = vmatprep.subr.mxu0 0.0
    %607 = vmatpush1.msra.mxu0 0.0
    %608 = vmatprep.subr.mxu0 0.0
    %609 = vmatpush1.msra.mxu0 0.0
    %610 = vmatprep.subr.mxu0 0.0
    %611 = vmatpush1.msra.mxu0 0.0
    %612 = vmatprep.subr.mxu0 0.0
    %613 = vmatpush1.msra.mxu0 0.0
    %614 = vmatprep.subr.mxu0 0.0
    %615 = vmatpush1.msra.mxu0 0.0
    %616 = vmatprep.subr.mxu0 0.0
    %617 = vmatpush1.msra.mxu0 0.0
    %618 = vmatprep.mubr.f32.mxu0 0.0
    %619 = vmatmul.mubr.f32.gmra.mrb[0].mxu0 %v552
    %v620 = vpop.f32.mrb[0].mxu0
    %v621 = vadd.f32 %v547, %v620
    %v622 = vpop.f32.mrb[0].mxu0
    %v623 = vadd.f32 %v549, %v622
    %624 = vdwg.mxu0
    %v625 = vadd.f32 %v621, %v266
    %v626 = vadd.f32 %v623, %v270
    %v627 = vxor.u32 %v625, 2147483648
    %v628 = vxor.u32 %v626, 2147483648
    %v629 = vmul.f32 %v627, 1.442695
    %v630 = vpow.pop %v629
    %v631 = vmul.f32 %v628, 1.442695
    %v632 = vpow.pop %v631
    %v633 = vadd.f32 %v630, 1.0
    %v634 = vadd.f32 %v632, 1.0
    %v635 = vrcp.pop %v633
    %v636 = vmul.f32 1.0, %v635
    %v637 = vrcp.pop %v634
    %v638 = vmul.f32 1.0, %v637
    %v639 = vtanh.pop %v626
    %v640 = vmul.f32 %v636, %v470
    %v641 = vmul.f32 %v636, %v639
    %643 = vrot.lane.b32.xlu0 %v641, 64
    %v644 = vpop.permute.xlu0 %643
    %v646 = vadd.f32 %v640, %v644
    %v647 = vtanh.pop %v646
    %v648 = vmul.f32 %v638, %v647
    %s649 = scalar_lea.vmem [#allocation2], 24
    %v650 = vld [vmem:[%s649] sm:$0xff]
    %652 = vrot.lane.b32.xlu0 %v648, 64
    %v653 = vpop.permute.xlu0 %652
    %v654 = vsel %vm105, %v653, 0
    %656 = vmatprep.subr.mxu0 %v90
    %657 = vmatpush1.msra.mxu0 %v89
    %658 = vmatprep.subr.mxu0 %v92
    %659 = vmatpush1.msra.mxu0 %v91
    %660 = vmatprep.subr.mxu0 %v94
    %661 = vmatpush1.msra.mxu0 %v93
    %662 = vmatprep.subr.mxu0 %v96
    %663 = vmatpush1.msra.mxu0 %v95
    %664 = vmatprep.subr.mxu0 %v98
    %665 = vmatpush1.msra.mxu0 %v97
    %666 = vmatprep.subr.mxu0 %v100
    %667 = vmatpush1.msra.mxu0 %v99
    %668 = vmatprep.subr.mxu0 %v102
    %669 = vmatpush1.msra.mxu0 %v101
    %670 = vmatprep.subr.mxu0 %v104
    %671 = vmatpush1.msra.mxu0 %v103
    %672 = vmatprep.subr.mxu0 0.0
    %673 = vmatpush1.msra.mxu0 0.0
    %674 = vmatprep.subr.mxu0 0.0
    %675 = vmatpush1.msra.mxu0 0.0
    %676 = vmatprep.subr.mxu0 0.0
    %677 = vmatpush1.msra.mxu0 0.0
    %678 = vmatprep.subr.mxu0 0.0
    %679 = vmatpush1.msra.mxu0 0.0
    %680 = vmatprep.subr.mxu0 0.0
    %681 = vmatpush1.msra.mxu0 0.0
    %682 = vmatprep.subr.mxu0 0.0
    %683 = vmatpush1.msra.mxu0 0.0
    %684 = vmatprep.subr.mxu0 0.0
    %685 = vmatpush1.msra.mxu0 0.0
    %686 = vmatprep.subr.mxu0 0.0
    %687 = vmatpush1.msra.mxu0 0.0
    %688 = vmatprep.subr.mxu0 0.0
    %689 = vmatpush1.msra.mxu0 0.0
    %690 = vmatprep.subr.mxu0 0.0
    %691 = vmatpush1.msra.mxu0 0.0
    %692 = vmatprep.subr.mxu0 0.0
    %693 = vmatpush1.msra.mxu0 0.0
    %694 = vmatprep.subr.mxu0 0.0
    %695 = vmatpush1.msra.mxu0 0.0
    %696 = vmatprep.subr.mxu0 0.0
    %697 = vmatpush1.msra.mxu0 0.0
    %698 = vmatprep.subr.mxu0 0.0
    %699 = vmatpush1.msra.mxu0 0.0
    %700 = vmatprep.subr.mxu0 0.0
    %701 = vmatpush1.msra.mxu0 0.0
    %702 = vmatprep.subr.mxu0 0.0
    %703 = vmatpush1.msra.mxu0 0.0
    %704 = vmatprep.subr.mxu0 0.0
    %705 = vmatpush1.msra.mxu0 0.0
    %706 = vmatprep.subr.mxu0 0.0
    %707 = vmatpush1.msra.mxu0 0.0
    %708 = vmatprep.subr.mxu0 0.0
    %709 = vmatpush1.msra.mxu0 0.0
    %710 = vmatprep.subr.mxu0 0.0
    %711 = vmatpush1.msra.mxu0 0.0
    %712 = vmatprep.subr.mxu0 0.0
    %713 = vmatpush1.msra.mxu0 0.0
    %714 = vmatprep.subr.mxu0 0.0
    %715 = vmatpush1.msra.mxu0 0.0
    %716 = vmatprep.subr.mxu0 0.0
    %717 = vmatpush1.msra.mxu0 0.0
    %718 = vmatprep.subr.mxu0 0.0
    %719 = vmatpush1.msra.mxu0 0.0
    %720 = vmatprep.mubr.f32.mxu0 0.0
    %721 = vmatmul.mubr.f32.gmra.mrb[0].mxu0 %v654
    %v722 = vpop.f32.mrb[0].mxu0
    %v723 = vadd.f32 0.0, %v722
    %v724 = vpop.f32.mrb[0].mxu0
    %v725 = vadd.f32 0.0, %v724
    %726 = vdwg.mxu0
    %v728 = vsel %vm180, %v650, 0
    %730 = vmatprep.subr.mxu0 %v80
    %731 = vmatpush1.msra.mxu0 %v79
    %732 = vmatprep.subr.mxu0 %v82
    %733 = vmatpush1.msra.mxu0 %v81
    %734 = vmatprep.subr.mxu0 %v84
    %735 = vmatpush1.msra.mxu0 %v83
    %736 = vmatprep.subr.mxu0 %v189
    %737 = vmatpush1.msra.mxu0 %v186
    %738 = vmatprep.subr.mxu0 0.0
    %739 = vmatpush1.msra.mxu0 0.0
    %740 = vmatprep.subr.mxu0 0.0
    %741 = vmatpush1.msra.mxu0 0.0
    %742 = vmatprep.subr.mxu0 0.0
    %743 = vmatpush1.msra.mxu0 0.0
    %744 = vmatprep.subr.mxu0 0.0
    %745 = vmatpush1.msra.mxu0 0.0
    %746 = vmatprep.subr.mxu0 0.0
    %747 = vmatpush1.msra.mxu0 0.0
    %748 = vmatprep.subr.mxu0 0.0
    %749 = vmatpush1.msra.mxu0 0.0
    %750 = vmatprep.subr.mxu0 0.0
    %751 = vmatpush1.msra.mxu0 0.0
    %752 = vmatprep.subr.mxu0 0.0
    %753 = vmatpush1.msra.mxu0 0.0
    %754 = vmatprep.subr.mxu0 0.0
    %755 = vmatpush1.msra.mxu0 0.0
    %756 = vmatprep.subr.mxu0 0.0
    %757 = vmatpush1.msra.mxu0 0.0
    %758 = vmatprep.subr.mxu0 0.0
    %759 = vmatpush1.msra.mxu0 0.0
    %760 = vmatprep.subr.mxu0 0.0
    %761 = vmatpush1.msra.mxu0 0.0
    %762 = vmatprep.subr.mxu0 0.0
    %763 = vmatpush1.msra.mxu0 0.0
    %764 = vmatprep.subr.mxu0 0.0
    %765 = vmatpush1.msra.mxu0 0.0
    %766 = vmatprep.subr.mxu0 0.0
    %767 = vmatpush1.msra.mxu0 0.0
    %768 = vmatprep.subr.mxu0 0.0
    %769 = vmatpush1.msra.mxu0 0.0
    %770 = vmatprep.subr.mxu0 0.0
    %771 = vmatpush1.msra.mxu0 0.0
    %772 = vmatprep.subr.mxu0 0.0
    %773 = vmatpush1.msra.mxu0 0.0
    %774 = vmatprep.subr.mxu0 0.0
    %775 = vmatpush1.msra.mxu0 0.0
    %776 = vmatprep.subr.mxu0 0.0
    %777 = vmatpush1.msra.mxu0 0.0
    %778 = vmatprep.subr.mxu0 0.0
    %779 = vmatpush1.msra.mxu0 0.0
    %780 = vmatprep.subr.mxu0 0.0
    %781 = vmatpush1.msra.mxu0 0.0
    %782 = vmatprep.subr.mxu0 0.0
    %783 = vmatpush1.msra.mxu0 0.0
    %784 = vmatprep.subr.mxu0 0.0
    %785 = vmatpush1.msra.mxu0 0.0
    %786 = vmatprep.subr.mxu0 0.0
    %787 = vmatpush1.msra.mxu0 0.0
    %788 = vmatprep.subr.mxu0 0.0
    %789 = vmatpush1.msra.mxu0 0.0
    %790 = vmatprep.subr.mxu0 0.0
    %791 = vmatpush1.msra.mxu0 0.0
    %792 = vmatprep.subr.mxu0 0.0
    %793 = vmatpush1.msra.mxu0 0.0
    %794 = vmatprep.mubr.f32.mxu0 0.0
    %795 = vmatmul.mubr.f32.gmra.mrb[0].mxu0 %v728
    %v796 = vpop.f32.mrb[0].mxu0
    %v797 = vadd.f32 %v723, %v796
    %v798 = vpop.f32.mrb[0].mxu0
    %v799 = vadd.f32 %v725, %v798
    %800 = vdwg.mxu0
    %v801 = vadd.f32 %v797, %v266
    %v802 = vadd.f32 %v799, %v270
    %v803 = vxor.u32 %v801, 2147483648
    %v804 = vxor.u32 %v802, 2147483648
    %v805 = vmul.f32 %v803, 1.442695
    %v806 = vpow.pop %v805
    %v807 = vmul.f32 %v804, 1.442695
    %v808 = vpow.pop %v807
    %v809 = vadd.f32 %v806, 1.0
    %v810 = vadd.f32 %v808, 1.0
    %v811 = vrcp.pop %v809
    %v812 = vmul.f32 1.0, %v811
    %v813 = vrcp.pop %v810
    %v814 = vmul.f32 1.0, %v813
    %v815 = vtanh.pop %v802
    %v816 = vmul.f32 %v812, %v646
    %v817 = vmul.f32 %v812, %v815
    %819 = vrot.lane.b32.xlu0 %v817, 64
    %v820 = vpop.permute.xlu0 %819
    %v822 = vadd.f32 %v816, %v820
    %v823 = vtanh.pop %v822
    %v824 = vmul.f32 %v814, %v823
    %s825 = scalar_lea.vmem [#allocation2], 32
    %v826 = vld [vmem:[%s825] sm:$0xff]
    %828 = vrot.lane.b32.xlu0 %v824, 64
    %v829 = vpop.permute.xlu0 %828
    %v830 = vsel %vm105, %v829, 0
    %832 = vmatprep.subr.mxu0 %v90
    %833 = vmatpush1.msra.mxu0 %v89
    %834 = vmatprep.subr.mxu0 %v92
    %835 = vmatpush1.msra.mxu0 %v91
    %836 = vmatprep.subr.mxu0 %v94
    %837 = vmatpush1.msra.mxu0 %v93
    %838 = vmatprep.subr.mxu0 %v96
    %839 = vmatpush1.msra.mxu0 %v95
    %840 = vmatprep.subr.mxu0 %v98
    %841 = vmatpush1.msra.mxu0 %v97
    %842 = vmatprep.subr.mxu0 %v100
    %843 = vmatpush1.msra.mxu0 %v99
    %844 = vmatprep.subr.mxu0 %v102
    %845 = vmatpush1.msra.mxu0 %v101
    %846 = vmatprep.subr.mxu0 %v104
    %847 = vmatpush1.msra.mxu0 %v103
    %848 = vmatprep.subr.mxu0 0.0
    %849 = vmatpush1.msra.mxu0 0.0
    %850 = vmatprep.subr.mxu0 0.0
    %851 = vmatpush1.msra.mxu0 0.0
    %852 = vmatprep.subr.mxu0 0.0
    %853 = vmatpush1.msra.mxu0 0.0
    %854 = vmatprep.subr.mxu0 0.0
    %855 = vmatpush1.msra.mxu0 0.0
    %856 = vmatprep.subr.mxu0 0.0
    %857 = vmatpush1.msra.mxu0 0.0
    %858 = vmatprep.subr.mxu0 0.0
    %859 = vmatpush1.msra.mxu0 0.0
    %860 = vmatprep.subr.mxu0 0.0
    %861 = vmatpush1.msra.mxu0 0.0
    %862 = vmatprep.subr.mxu0 0.0
    %863 = vmatpush1.msra.mxu0 0.0
    %864 = vmatprep.subr.mxu0 0.0
    %865 = vmatpush1.msra.mxu0 0.0
    %866 = vmatprep.subr.mxu0 0.0
    %867 = vmatpush1.msra.mxu0 0.0
    %868 = vmatprep.subr.mxu0 0.0
    %869 = vmatpush1.msra.mxu0 0.0
    %870 = vmatprep.subr.mxu0 0.0
    %871 = vmatpush1.msra.mxu0 0.0
    %872 = vmatprep.subr.mxu0 0.0
    %873 = vmatpush1.msra.mxu0 0.0
    %874 = vmatprep.subr.mxu0 0.0
    %875 = vmatpush1.msra.mxu0 0.0
    %876 = vmatprep.subr.mxu0 0.0
    %877 = vmatpush1.msra.mxu0 0.0
    %878 = vmatprep.subr.mxu0 0.0
    %879 = vmatpush1.msra.mxu0 0.0
    %880 = vmatprep.subr.mxu0 0.0
    %881 = vmatpush1.msra.mxu0 0.0
    %882 = vmatprep.subr.mxu0 0.0
    %883 = vmatpush1.msra.mxu0 0.0
    %884 = vmatprep.subr.mxu0 0.0
    %885 = vmatpush1.msra.mxu0 0.0
    %886 = vmatprep.subr.mxu0 0.0
    %887 = vmatpush1.msra.mxu0 0.0
    %888 = vmatprep.subr.mxu0 0.0
    %889 = vmatpush1.msra.mxu0 0.0
    %890 = vmatprep.subr.mxu0 0.0
    %891 = vmatpush1.msra.mxu0 0.0
    %892 = vmatprep.subr.mxu0 0.0
    %893 = vmatpush1.msra.mxu0 0.0
    %894 = vmatprep.subr.mxu0 0.0
    %895 = vmatpush1.msra.mxu0 0.0
    %896 = vmatprep.mubr.f32.mxu0 0.0
    %897 = vmatmul.mubr.f32.gmra.mrb[0].mxu0 %v830
    %v898 = vpop.f32.mrb[0].mxu0
    %v899 = vadd.f32 0.0, %v898
    %v900 = vpop.f32.mrb[0].mxu0
    %v901 = vadd.f32 0.0, %v900
    %902 = vdwg.mxu0
    %v904 = vsel %vm180, %v826, 0
    %906 = vmatprep.subr.mxu0 %v80
    %907 = vmatpush1.msra.mxu0 %v79
    %908 = vmatprep.subr.mxu0 %v82
    %909 = vmatpush1.msra.mxu0 %v81
    %910 = vmatprep.subr.mxu0 %v84
    %911 = vmatpush1.msra.mxu0 %v83
    %912 = vmatprep.subr.mxu0 %v189
    %913 = vmatpush1.msra.mxu0 %v186
    %914 = vmatprep.subr.mxu0 0.0
    %915 = vmatpush1.msra.mxu0 0.0
    %916 = vmatprep.subr.mxu0 0.0
    %917 = vmatpush1.msra.mxu0 0.0
    %918 = vmatprep.subr.mxu0 0.0
    %919 = vmatpush1.msra.mxu0 0.0
    %920 = vmatprep.subr.mxu0 0.0
    %921 = vmatpush1.msra.mxu0 0.0
    %922 = vmatprep.subr.mxu0 0.0
    %923 = vmatpush1.msra.mxu0 0.0
    %924 = vmatprep.subr.mxu0 0.0
    %925 = vmatpush1.msra.mxu0 0.0
    %926 = vmatprep.subr.mxu0 0.0
    %927 = vmatpush1.msra.mxu0 0.0
    %928 = vmatprep.subr.mxu0 0.0
    %929 = vmatpush1.msra.mxu0 0.0
    %930 = vmatprep.subr.mxu0 0.0
    %931 = vmatpush1.msra.mxu0 0.0
    %932 = vmatprep.subr.mxu0 0.0
    %933 = vmatpush1.msra.mxu0 0.0
    %934 = vmatprep.subr.mxu0 0.0
    %935 = vmatpush1.msra.mxu0 0.0
    %936 = vmatprep.subr.mxu0 0.0
    %937 = vmatpush1.msra.mxu0 0.0
    %938 = vmatprep.subr.mxu0 0.0
    %939 = vmatpush1.msra.mxu0 0.0
    %940 = vmatprep.subr.mxu0 0.0
    %941 = vmatpush1.msra.mxu0 0.0
    %942 = vmatprep.subr.mxu0 0.0
    %943 = vmatpush1.msra.mxu0 0.0
    %944 = vmatprep.subr.mxu0 0.0
    %945 = vmatpush1.msra.mxu0 0.0
    %946 = vmatprep.subr.mxu0 0.0
    %947 = vmatpush1.msra.mxu0 0.0
    %948 = vmatprep.subr.mxu0 0.0
    %949 = vmatpush1.msra.mxu0 0.0
    %950 = vmatprep.subr.mxu0 0.0
    %951 = vmatpush1.msra.mxu0 0.0
    %952 = vmatprep.subr.mxu0 0.0
    %953 = vmatpush1.msra.mxu0 0.0
    %954 = vmatprep.subr.mxu0 0.0
    %955 = vmatpush1.msra.mxu0 0.0
    %956 = vmatprep.subr.mxu0 0.0
    %957 = vmatpush1.msra.mxu0 0.0
    %958 = vmatprep.subr.mxu0 0.0
    %959 = vmatpush1.msra.mxu0 0.0
    %960 = vmatprep.subr.mxu0 0.0
    %961 = vmatpush1.msra.mxu0 0.0
    %962 = vmatprep.subr.mxu0 0.0
    %963 = vmatpush1.msra.mxu0 0.0
    %964 = vmatprep.subr.mxu0 0.0
    %965 = vmatpush1.msra.mxu0 0.0
    %966 = vmatprep.subr.mxu0 0.0
    %967 = vmatpush1.msra.mxu0 0.0
    %968 = vmatprep.subr.mxu0 0.0
    %969 = vmatpush1.msra.mxu0 0.0
    %970 = vmatprep.mubr.f32.mxu0 0.0
    %971 = vmatmul.mubr.f32.gmra.mrb[0].mxu0 %v904
    %v972 = vpop.f32.mrb[0].mxu0
    %v973 = vadd.f32 %v899, %v972
    %v974 = vpop.f32.mrb[0].mxu0
    %v975 = vadd.f32 %v901, %v974
    %976 = vdwg.mxu0
    %v977 = vadd.f32 %v973, %v266
    %v978 = vadd.f32 %v975, %v270
    %v979 = vxor.u32 %v977, 2147483648
    %v980 = vxor.u32 %v978, 2147483648
    %v981 = vmul.f32 %v979, 1.442695
    %v982 = vpow.pop %v981
    %v983 = vmul.f32 %v980, 1.442695
    %v984 = vpow.pop %v983
    %v985 = vadd.f32 %v982, 1.0
    %v986 = vadd.f32 %v984, 1.0
    %v987 = vrcp.pop %v985
    %v988 = vmul.f32 1.0, %v987
    %v989 = vrcp.pop %v986
    %v990 = vmul.f32 1.0, %v989
    %v991 = vtanh.pop %v978
    %v992 = vmul.f32 %v988, %v822
    %v993 = vmul.f32 %v988, %v991
    %995 = vrot.lane.b32.xlu0 %v993, 64
    %v996 = vpop.permute.xlu0 %995
    %v998 = vadd.f32 %v992, %v996
    %v999 = vtanh.pop %v998
    %v1000 = vmul.f32 %v990, %v999
    %s1001 = scalar_lea.vmem [#allocation2], 40
    %v1002 = vld [vmem:[%s1001] sm:$0xff]
    %1004 = vrot.lane.b32.xlu0 %v1000, 64
    %v1005 = vpop.permute.xlu0 %1004
    %v1006 = vsel %vm105, %v1005, 0
    %1008 = vmatprep.subr.mxu0 %v90
    %1009 = vmatpush1.msra.mxu0 %v89
    %1010 = vmatprep.subr.mxu0 %v92
    %1011 = vmatpush1.msra.mxu0 %v91
    %1012 = vmatprep.subr.mxu0 %v94
    %1013 = vmatpush1.msra.mxu0 %v93
    %1014 = vmatprep.subr.mxu0 %v96
    %1015 = vmatpush1.msra.mxu0 %v95
    %1016 = vmatprep.subr.mxu0 %v98
    %1017 = vmatpush1.msra.mxu0 %v97
    %1018 = vmatprep.subr.mxu0 %v100
    %1019 = vmatpush1.msra.mxu0 %v99
    %1020 = vmatprep.subr.mxu0 %v102
    %1021 = vmatpush1.msra.mxu0 %v101
    %1022 = vmatprep.subr.mxu0 %v104
    %1023 = vmatpush1.msra.mxu0 %v103
    %1024 = vmatprep.subr.mxu0 0.0
    %1025 = vmatpush1.msra.mxu0 0.0
    %1026 = vmatprep.subr.mxu0 0.0
    %1027 = vmatpush1.msra.mxu0 0.0
    %1028 = vmatprep.subr.mxu0 0.0
    %1029 = vmatpush1.msra.mxu0 0.0
    %1030 = vmatprep.subr.mxu0 0.0
    %1031 = vmatpush1.msra.mxu0 0.0
    %1032 = vmatprep.subr.mxu0 0.0
    %1033 = vmatpush1.msra.mxu0 0.0
    %1034 = vmatprep.subr.mxu0 0.0
    %1035 = vmatpush1.msra.mxu0 0.0
    %1036 = vmatprep.subr.mxu0 0.0
    %1037 = vmatpush1.msra.mxu0 0.0
    %1038 = vmatprep.subr.mxu0 0.0
    %1039 = vmatpush1.msra.mxu0 0.0
    %1040 = vmatprep.subr.mxu0 0.0
    %1041 = vmatpush1.msra.mxu0 0.0
    %1042 = vmatprep.subr.mxu0 0.0
    %1043 = vmatpush1.msra.mxu0 0.0
    %1044 = vmatprep.subr.mxu0 0.0
    %1045 = vmatpush1.msra.mxu0 0.0
    %1046 = vmatprep.subr.mxu0 0.0
    %1047 = vmatpush1.msra.mxu0 0.0
    %1048 = vmatprep.subr.mxu0 0.0
    %1049 = vmatpush1.msra.mxu0 0.0
    %1050 = vmatprep.subr.mxu0 0.0
    %1051 = vmatpush1.msra.mxu0 0.0
    %1052 = vmatprep.subr.mxu0 0.0
    %1053 = vmatpush1.msra.mxu0 0.0
    %1054 = vmatprep.subr.mxu0 0.0
    %1055 = vmatpush1.msra.mxu0 0.0
    %1056 = vmatprep.subr.mxu0 0.0
    %1057 = vmatpush1.msra.mxu0 0.0
    %1058 = vmatprep.subr.mxu0 0.0
    %1059 = vmatpush1.msra.mxu0 0.0
    %1060 = vmatprep.subr.mxu0 0.0
    %1061 = vmatpush1.msra.mxu0 0.0
    %1062 = vmatprep.subr.mxu0 0.0
    %1063 = vmatpush1.msra.mxu0 0.0
    %1064 = vmatprep.subr.mxu0 0.0
    %1065 = vmatpush1.msra.mxu0 0.0
    %1066 = vmatprep.subr.mxu0 0.0
    %1067 = vmatpush1.msra.mxu0 0.0
    %1068 = vmatprep.subr.mxu0 0.0
    %1069 = vmatpush1.msra.mxu0 0.0
    %1070 = vmatprep.subr.mxu0 0.0
    %1071 = vmatpush1.msra.mxu0 0.0
    %1072 = vmatprep.mubr.f32.mxu0 0.0
    %1073 = vmatmul.mubr.f32.gmra.mrb[0].mxu0 %v1006
    %v1074 = vpop.f32.mrb[0].mxu0
    %v1075 = vadd.f32 0.0, %v1074
    %v1076 = vpop.f32.mrb[0].mxu0
    %v1077 = vadd.f32 0.0, %v1076
    %1078 = vdwg.mxu0
    %v1080 = vsel %vm180, %v1002, 0
    %1082 = vmatprep.subr.mxu0 %v80
    %1083 = vmatpush1.msra.mxu0 %v79
    %1084 = vmatprep.subr.mxu0 %v82
    %1085 = vmatpush1.msra.mxu0 %v81
    %1086 = vmatprep.subr.mxu0 %v84
    %1087 = vmatpush1.msra.mxu0 %v83
    %1088 = vmatprep.subr.mxu0 %v189
    %1089 = vmatpush1.msra.mxu0 %v186
    %1090 = vmatprep.subr.mxu0 0.0
    %1091 = vmatpush1.msra.mxu0 0.0
    %1092 = vmatprep.subr.mxu0 0.0
    %1093 = vmatpush1.msra.mxu0 0.0
    %1094 = vmatprep.subr.mxu0 0.0
    %1095 = vmatpush1.msra.mxu0 0.0
    %1096 = vmatprep.subr.mxu0 0.0
    %1097 = vmatpush1.msra.mxu0 0.0
    %1098 = vmatprep.subr.mxu0 0.0
    %1099 = vmatpush1.msra.mxu0 0.0
    %1100 = vmatprep.subr.mxu0 0.0
    %1101 = vmatpush1.msra.mxu0 0.0
    %1102 = vmatprep.subr.mxu0 0.0
    %1103 = vmatpush1.msra.mxu0 0.0
    %1104 = vmatprep.subr.mxu0 0.0
    %1105 = vmatpush1.msra.mxu0 0.0
    %1106 = vmatprep.subr.mxu0 0.0
    %1107 = vmatpush1.msra.mxu0 0.0
    %1108 = vmatprep.subr.mxu0 0.0
    %1109 = vmatpush1.msra.mxu0 0.0
    %1110 = vmatprep.subr.mxu0 0.0
    %1111 = vmatpush1.msra.mxu0 0.0
    %1112 = vmatprep.subr.mxu0 0.0
    %1113 = vmatpush1.msra.mxu0 0.0
    %1114 = vmatprep.subr.mxu0 0.0
    %1115 = vmatpush1.msra.mxu0 0.0
    %1116 = vmatprep.subr.mxu0 0.0
    %1117 = vmatpush1.msra.mxu0 0.0
    %1118 = vmatprep.subr.mxu0 0.0
    %1119 = vmatpush1.msra.mxu0 0.0
    %1120 = vmatprep.subr.mxu0 0.0
    %1121 = vmatpush1.msra.mxu0 0.0
    %1122 = vmatprep.subr.mxu0 0.0
    %1123 = vmatpush1.msra.mxu0 0.0
    %1124 = vmatprep.subr.mxu0 0.0
    %1125 = vmatpush1.msra.mxu0 0.0
    %1126 = vmatprep.subr.mxu0 0.0
    %1127 = vmatpush1.msra.mxu0 0.0
    %1128 = vmatprep.subr.mxu0 0.0
    %1129 = vmatpush1.msra.mxu0 0.0
    %1130 = vmatprep.subr.mxu0 0.0
    %1131 = vmatpush1.msra.mxu0 0.0
    %1132 = vmatprep.subr.mxu0 0.0
    %1133 = vmatpush1.msra.mxu0 0.0
    %1134 = vmatprep.subr.mxu0 0.0
    %1135 = vmatpush1.msra.mxu0 0.0
    %1136 = vmatprep.subr.mxu0 0.0
    %1137 = vmatpush1.msra.mxu0 0.0
    %1138 = vmatprep.subr.mxu0 0.0
    %1139 = vmatpush1.msra.mxu0 0.0
    %1140 = vmatprep.subr.mxu0 0.0
    %1141 = vmatpush1.msra.mxu0 0.0
    %1142 = vmatprep.subr.mxu0 0.0
    %1143 = vmatpush1.msra.mxu0 0.0
    %1144 = vmatprep.subr.mxu0 0.0
    %1145 = vmatpush1.msra.mxu0 0.0
    %1146 = vmatprep.mubr.f32.mxu0 0.0
    %1147 = vmatmul.mubr.f32.gmra.mrb[0].mxu0 %v1080
    %v1148 = vpop.f32.mrb[0].mxu0
    %v1149 = vadd.f32 %v1075, %v1148
    %v1150 = vpop.f32.mrb[0].mxu0
    %v1151 = vadd.f32 %v1077, %v1150
    %1152 = vdwg.mxu0
    %v1153 = vadd.f32 %v1149, %v266
    %v1154 = vadd.f32 %v1151, %v270
    %v1155 = vxor.u32 %v1153, 2147483648
    %v1156 = vxor.u32 %v1154, 2147483648
    %v1157 = vmul.f32 %v1155, 1.442695
    %v1158 = vpow.pop %v1157
    %v1159 = vmul.f32 %v1156, 1.442695
    %v1160 = vpow.pop %v1159
    %v1161 = vadd.f32 %v1158, 1.0
    %v1162 = vadd.f32 %v1160, 1.0
    %v1163 = vrcp.pop %v1161
    %v1164 = vmul.f32 1.0, %v1163
    %v1165 = vrcp.pop %v1162
    %v1166 = vmul.f32 1.0, %v1165
    %v1167 = vtanh.pop %v1154
    %v1168 = vmul.f32 %v1164, %v998
    %v1169 = vmul.f32 %v1164, %v1167
    %1171 = vrot.lane.b32.xlu0 %v1169, 64
    %v1172 = vpop.permute.xlu0 %1171
    %v1174 = vadd.f32 %v1168, %v1172
    %v1175 = vtanh.pop %v1174
    %v1176 = vmul.f32 %v1166, %v1175
    %s1177 = scalar_lea.vmem [#allocation2], 48
    %v1178 = vld [vmem:[%s1177] sm:$0xff]
    %1180 = vrot.lane.b32.xlu0 %v1176, 64
    %v1181 = vpop.permute.xlu0 %1180
    %v1182 = vsel %vm105, %v1181, 0
    %1184 = vmatprep.subr.mxu0 %v90
    %1185 = vmatpush1.msra.mxu0 %v89
    %1186 = vmatprep.subr.mxu0 %v92
    %1187 = vmatpush1.msra.mxu0 %v91
    %1188 = vmatprep.subr.mxu0 %v94
    %1189 = vmatpush1.msra.mxu0 %v93
    %1190 = vmatprep.subr.mxu0 %v96
    %1191 = vmatpush1.msra.mxu0 %v95
    %1192 = vmatprep.subr.mxu0 %v98
    %1193 = vmatpush1.msra.mxu0 %v97
    %1194 = vmatprep.subr.mxu0 %v100
    %1195 = vmatpush1.msra.mxu0 %v99
    %1196 = vmatprep.subr.mxu0 %v102
    %1197 = vmatpush1.msra.mxu0 %v101
    %1198 = vmatprep.subr.mxu0 %v104
    %1199 = vmatpush1.msra.mxu0 %v103
    %1200 = vmatprep.subr.mxu0 0.0
    %1201 = vmatpush1.msra.mxu0 0.0
    %1202 = vmatprep.subr.mxu0 0.0
    %1203 = vmatpush1.msra.mxu0 0.0
    %1204 = vmatprep.subr.mxu0 0.0
    %1205 = vmatpush1.msra.mxu0 0.0
    %1206 = vmatprep.subr.mxu0 0.0
    %1207 = vmatpush1.msra.mxu0 0.0
    %1208 = vmatprep.subr.mxu0 0.0
    %1209 = vmatpush1.msra.mxu0 0.0
    %1210 = vmatprep.subr.mxu0 0.0
    %1211 = vmatpush1.msra.mxu0 0.0
    %1212 = vmatprep.subr.mxu0 0.0
    %1213 = vmatpush1.msra.mxu0 0.0
    %1214 = vmatprep.subr.mxu0 0.0
    %1215 = vmatpush1.msra.mxu0 0.0
    %1216 = vmatprep.subr.mxu0 0.0
    %1217 = vmatpush1.msra.mxu0 0.0
    %1218 = vmatprep.subr.mxu0 0.0
    %1219 = vmatpush1.msra.mxu0 0.0
    %1220 = vmatprep.subr.mxu0 0.0
    %1221 = vmatpush1.msra.mxu0 0.0
    %1222 = vmatprep.subr.mxu0 0.0
    %1223 = vmatpush1.msra.mxu0 0.0
    %1224 = vmatprep.subr.mxu0 0.0
    %1225 = vmatpush1.msra.mxu0 0.0
    %1226 = vmatprep.subr.mxu0 0.0
    %1227 = vmatpush1.msra.mxu0 0.0
    %1228 = vmatprep.subr.mxu0 0.0
    %1229 = vmatpush1.msra.mxu0 0.0
    %1230 = vmatprep.subr.mxu0 0.0
    %1231 = vmatpush1.msra.mxu0 0.0
    %1232 = vmatprep.subr.mxu0 0.0
    %1233 = vmatpush1.msra.mxu0 0.0
    %1234 = vmatprep.subr.mxu0 0.0
    %1235 = vmatpush1.msra.mxu0 0.0
    %1236 = vmatprep.subr.mxu0 0.0
    %1237 = vmatpush1.msra.mxu0 0.0
    %1238 = vmatprep.subr.mxu0 0.0
    %1239 = vmatpush1.msra.mxu0 0.0
    %1240 = vmatprep.subr.mxu0 0.0
    %1241 = vmatpush1.msra.mxu0 0.0
    %1242 = vmatprep.subr.mxu0 0.0
    %1243 = vmatpush1.msra.mxu0 0.0
    %1244 = vmatprep.subr.mxu0 0.0
    %1245 = vmatpush1.msra.mxu0 0.0
    %1246 = vmatprep.subr.mxu0 0.0
    %1247 = vmatpush1.msra.mxu0 0.0
    %1248 = vmatprep.mubr.f32.mxu0 0.0
    %1249 = vmatmul.mubr.f32.gmra.mrb[0].mxu0 %v1182
    %v1250 = vpop.f32.mrb[0].mxu0
    %v1251 = vadd.f32 0.0, %v1250
    %v1252 = vpop.f32.mrb[0].mxu0
    %v1253 = vadd.f32 0.0, %v1252
    %1254 = vdwg.mxu0
    %v1256 = vsel %vm180, %v1178, 0
    %1258 = vmatprep.subr.mxu0 %v80
    %1259 = vmatpush1.msra.mxu0 %v79
    %1260 = vmatprep.subr.mxu0 %v82
    %1261 = vmatpush1.msra.mxu0 %v81
    %1262 = vmatprep.subr.mxu0 %v84
    %1263 = vmatpush1.msra.mxu0 %v83
    %1264 = vmatprep.subr.mxu0 %v189
    %1265 = vmatpush1.msra.mxu0 %v186
    %1266 = vmatprep.subr.mxu0 0.0
    %1267 = vmatpush1.msra.mxu0 0.0
    %1268 = vmatprep.subr.mxu0 0.0
    %1269 = vmatpush1.msra.mxu0 0.0
    %1270 = vmatprep.subr.mxu0 0.0
    %1271 = vmatpush1.msra.mxu0 0.0
    %1272 = vmatprep.subr.mxu0 0.0
    %1273 = vmatpush1.msra.mxu0 0.0
    %1274 = vmatprep.subr.mxu0 0.0
    %1275 = vmatpush1.msra.mxu0 0.0
    %1276 = vmatprep.subr.mxu0 0.0
    %1277 = vmatpush1.msra.mxu0 0.0
    %1278 = vmatprep.subr.mxu0 0.0
    %1279 = vmatpush1.msra.mxu0 0.0
    %1280 = vmatprep.subr.mxu0 0.0
    %1281 = vmatpush1.msra.mxu0 0.0
    %1282 = vmatprep.subr.mxu0 0.0
    %1283 = vmatpush1.msra.mxu0 0.0
    %1284 = vmatprep.subr.mxu0 0.0
    %1285 = vmatpush1.msra.mxu0 0.0
    %1286 = vmatprep.subr.mxu0 0.0
    %1287 = vmatpush1.msra.mxu0 0.0
    %1288 = vmatprep.subr.mxu0 0.0
    %1289 = vmatpush1.msra.mxu0 0.0
    %1290 = vmatprep.subr.mxu0 0.0
    %1291 = vmatpush1.msra.mxu0 0.0
    %1292 = vmatprep.subr.mxu0 0.0
    %1293 = vmatpush1.msra.mxu0 0.0
    %1294 = vmatprep.subr.mxu0 0.0
    %1295 = vmatpush1.msra.mxu0 0.0
    %1296 = vmatprep.subr.mxu0 0.0
    %1297 = vmatpush1.msra.mxu0 0.0
    %1298 = vmatprep.subr.mxu0 0.0
    %1299 = vmatpush1.msra.mxu0 0.0
    %1300 = vmatprep.subr.mxu0 0.0
    %1301 = vmatpush1.msra.mxu0 0.0
    %1302 = vmatprep.subr.mxu0 0.0
    %1303 = vmatpush1.msra.mxu0 0.0
    %1304 = vmatprep.subr.mxu0 0.0
    %1305 = vmatpush1.msra.mxu0 0.0
    %1306 = vmatprep.subr.mxu0 0.0
    %1307 = vmatpush1.msra.mxu0 0.0
    %1308 = vmatprep.subr.mxu0 0.0
    %1309 = vmatpush1.msra.mxu0 0.0
    %1310 = vmatprep.subr.mxu0 0.0
    %1311 = vmatpush1.msra.mxu0 0.0
    %1312 = vmatprep.subr.mxu0 0.0
    %1313 = vmatpush1.msra.mxu0 0.0
    %1314 = vmatprep.subr.mxu0 0.0
    %1315 = vmatpush1.msra.mxu0 0.0
    %1316 = vmatprep.subr.mxu0 0.0
    %1317 = vmatpush1.msra.mxu0 0.0
    %1318 = vmatprep.subr.mxu0 0.0
    %1319 = vmatpush1.msra.mxu0 0.0
    %1320 = vmatprep.subr.mxu0 0.0
    %1321 = vmatpush1.msra.mxu0 0.0
    %1322 = vmatprep.mubr.f32.mxu0 0.0
    %1323 = vmatmul.mubr.f32.gmra.mrb[0].mxu0 %v1256
    %v1324 = vpop.f32.mrb[0].mxu0
    %v1325 = vadd.f32 %v1251, %v1324
    %v1326 = vpop.f32.mrb[0].mxu0
    %v1327 = vadd.f32 %v1253, %v1326
    %1328 = vdwg.mxu0
    %v1329 = vadd.f32 %v1325, %v266
    %v1330 = vadd.f32 %v1327, %v270
    %v1331 = vxor.u32 %v1329, 2147483648
    %v1332 = vxor.u32 %v1330, 2147483648
    %v1333 = vmul.f32 %v1331, 1.442695
    %v1334 = vpow.pop %v1333
    %v1335 = vmul.f32 %v1332, 1.442695
    %v1336 = vpow.pop %v1335
    %v1337 = vadd.f32 %v1334, 1.0
    %v1338 = vadd.f32 %v1336, 1.0
    %v1339 = vrcp.pop %v1337
    %v1340 = vmul.f32 1.0, %v1339
    %v1341 = vrcp.pop %v1338
    %v1342 = vmul.f32 1.0, %v1341
    %v1343 = vtanh.pop %v1330
    %v1344 = vmul.f32 %v1340, %v1174
    %v1345 = vmul.f32 %v1340, %v1343
    %1347 = vrot.lane.b32.xlu0 %v1345, 64
    %v1348 = vpop.permute.xlu0 %1347
    %v1350 = vadd.f32 %v1344, %v1348
    %v1351 = vtanh.pop %v1350
    %v1352 = vmul.f32 %v1342, %v1351
    %s1353 = scalar_lea.vmem [#allocation2], 56
    %v1354 = vld [vmem:[%s1353] sm:$0xff]
    %1356 = vrot.lane.b32.xlu0 %v1352, 64
    %v1357 = vpop.permute.xlu0 %1356
    %v1358 = vsel %vm105, %v1357, 0
    %1360 = vmatprep.subr.mxu0 %v90
    %1361 = vmatpush1.msra.mxu0 %v89
    %1362 = vmatprep.subr.mxu0 %v92
    %1363 = vmatpush1.msra.mxu0 %v91
    %1364 = vmatprep.subr.mxu0 %v94
    %1365 = vmatpush1.msra.mxu0 %v93
    %1366 = vmatprep.subr.mxu0 %v96
    %1367 = vmatpush1.msra.mxu0 %v95
    %1368 = vmatprep.subr.mxu0 %v98
    %1369 = vmatpush1.msra.mxu0 %v97
    %1370 = vmatprep.subr.mxu0 %v100
    %1371 = vmatpush1.msra.mxu0 %v99
    %1372 = vmatprep.subr.mxu0 %v102
    %1373 = vmatpush1.msra.mxu0 %v101
    %1374 = vmatprep.subr.mxu0 %v104
    %1375 = vmatpush1.msra.mxu0 %v103
    %1376 = vmatprep.subr.mxu0 0.0
    %1377 = vmatpush1.msra.mxu0 0.0
    %1378 = vmatprep.subr.mxu0 0.0
    %1379 = vmatpush1.msra.mxu0 0.0
    %1380 = vmatprep.subr.mxu0 0.0
    %1381 = vmatpush1.msra.mxu0 0.0
    %1382 = vmatprep.subr.mxu0 0.0
    %1383 = vmatpush1.msra.mxu0 0.0
    %1384 = vmatprep.subr.mxu0 0.0
    %1385 = vmatpush1.msra.mxu0 0.0
    %1386 = vmatprep.subr.mxu0 0.0
    %1387 = vmatpush1.msra.mxu0 0.0
    %1388 = vmatprep.subr.mxu0 0.0
    %1389 = vmatpush1.msra.mxu0 0.0
    %1390 = vmatprep.subr.mxu0 0.0
    %1391 = vmatpush1.msra.mxu0 0.0
    %1392 = vmatprep.subr.mxu0 0.0
    %1393 = vmatpush1.msra.mxu0 0.0
    %1394 = vmatprep.subr.mxu0 0.0
    %1395 = vmatpush1.msra.mxu0 0.0
    %1396 = vmatprep.subr.mxu0 0.0
    %1397 = vmatpush1.msra.mxu0 0.0
    %1398 = vmatprep.subr.mxu0 0.0
    %1399 = vmatpush1.msra.mxu0 0.0
    %1400 = vmatprep.subr.mxu0 0.0
    %1401 = vmatpush1.msra.mxu0 0.0
    %1402 = vmatprep.subr.mxu0 0.0
    %1403 = vmatpush1.msra.mxu0 0.0
    %1404 = vmatprep.subr.mxu0 0.0
    %1405 = vmatpush1.msra.mxu0 0.0
    %1406 = vmatprep.subr.mxu0 0.0
    %1407 = vmatpush1.msra.mxu0 0.0
    %1408 = vmatprep.subr.mxu0 0.0
    %1409 = vmatpush1.msra.mxu0 0.0
    %1410 = vmatprep.subr.mxu0 0.0
    %1411 = vmatpush1.msra.mxu0 0.0
    %1412 = vmatprep.subr.mxu0 0.0
    %1413 = vmatpush1.msra.mxu0 0.0
    %1414 = vmatprep.subr.mxu0 0.0
    %1415 = vmatpush1.msra.mxu0 0.0
    %1416 = vmatprep.subr.mxu0 0.0
    %1417 = vmatpush1.msra.mxu0 0.0
    %1418 = vmatprep.subr.mxu0 0.0
    %1419 = vmatpush1.msra.mxu0 0.0
    %1420 = vmatprep.subr.mxu0 0.0
    %1421 = vmatpush1.msra.mxu0 0.0
    %1422 = vmatprep.subr.mxu0 0.0
    %1423 = vmatpush1.msra.mxu0 0.0
    %1424 = vmatprep.mubr.f32.mxu0 0.0
    %1425 = vmatmul.mubr.f32.gmra.mrb[0].mxu0 %v1358
    %v1426 = vpop.f32.mrb[0].mxu0
    %v1427 = vadd.f32 0.0, %v1426
    %v1428 = vpop.f32.mrb[0].mxu0
    %v1429 = vadd.f32 0.0, %v1428
    %1430 = vdwg.mxu0
    %v1432 = vsel %vm180, %v1354, 0
    %1434 = vmatprep.subr.mxu0 %v80
    %1435 = vmatpush1.msra.mxu0 %v79
    %1436 = vmatprep.subr.mxu0 %v82
    %1437 = vmatpush1.msra.mxu0 %v81
    %1438 = vmatprep.subr.mxu0 %v84
    %1439 = vmatpush1.msra.mxu0 %v83
    %1440 = vmatprep.subr.mxu0 %v189
    %1441 = vmatpush1.msra.mxu0 %v186
    %1442 = vmatprep.subr.mxu0 0.0
    %1443 = vmatpush1.msra.mxu0 0.0
    %1444 = vmatprep.subr.mxu0 0.0
    %1445 = vmatpush1.msra.mxu0 0.0
    %1446 = vmatprep.subr.mxu0 0.0
    %1447 = vmatpush1.msra.mxu0 0.0
    %1448 = vmatprep.subr.mxu0 0.0
    %1449 = vmatpush1.msra.mxu0 0.0
    %1450 = vmatprep.subr.mxu0 0.0
    %1451 = vmatpush1.msra.mxu0 0.0
    %1452 = vmatprep.subr.mxu0 0.0
    %1453 = vmatpush1.msra.mxu0 0.0
    %1454 = vmatprep.subr.mxu0 0.0
    %1455 = vmatpush1.msra.mxu0 0.0
    %1456 = vmatprep.subr.mxu0 0.0
    %1457 = vmatpush1.msra.mxu0 0.0
    %1458 = vmatprep.subr.mxu0 0.0
    %1459 = vmatpush1.msra.mxu0 0.0
    %1460 = vmatprep.subr.mxu0 0.0
    %1461 = vmatpush1.msra.mxu0 0.0
    %1462 = vmatprep.subr.mxu0 0.0
    %1463 = vmatpush1.msra.mxu0 0.0
    %1464 = vmatprep.subr.mxu0 0.0
    %1465 = vmatpush1.msra.mxu0 0.0
    %1466 = vmatprep.subr.mxu0 0.0
    %1467 = vmatpush1.msra.mxu0 0.0
    %1468 = vmatprep.subr.mxu0 0.0
    %1469 = vmatpush1.msra.mxu0 0.0
    %1470 = vmatprep.subr.mxu0 0.0
    %1471 = vmatpush1.msra.mxu0 0.0
    %1472 = vmatprep.subr.mxu0 0.0
    %1473 = vmatpush1.msra.mxu0 0.0
    %1474 = vmatprep.subr.mxu0 0.0
    %1475 = vmatpush1.msra.mxu0 0.0
    %1476 = vmatprep.subr.mxu0 0.0
    %1477 = vmatpush1.msra.mxu0 0.0
    %1478 = vmatprep.subr.mxu0 0.0
    %1479 = vmatpush1.msra.mxu0 0.0
    %1480 = vmatprep.subr.mxu0 0.0
    %1481 = vmatpush1.msra.mxu0 0.0
    %1482 = vmatprep.subr.mxu0 0.0
    %1483 = vmatpush1.msra.mxu0 0.0
    %1484 = vmatprep.subr.mxu0 0.0
    %1485 = vmatpush1.msra.mxu0 0.0
    %1486 = vmatprep.subr.mxu0 0.0
    %1487 = vmatpush1.msra.mxu0 0.0
    %1488 = vmatprep.subr.mxu0 0.0
    %1489 = vmatpush1.msra.mxu0 0.0
    %1490 = vmatprep.subr.mxu0 0.0
    %1491 = vmatpush1.msra.mxu0 0.0
    %1492 = vmatprep.subr.mxu0 0.0
    %1493 = vmatpush1.msra.mxu0 0.0
    %1494 = vmatprep.subr.mxu0 0.0
    %1495 = vmatpush1.msra.mxu0 0.0
    %1496 = vmatprep.subr.mxu0 0.0
    %1497 = vmatpush1.msra.mxu0 0.0
    %1498 = vmatprep.mubr.f32.mxu0 0.0
    %1499 = vmatmul.mubr.f32.gmra.mrb[0].mxu0 %v1432
    %v1500 = vpop.f32.mrb[0].mxu0
    %v1501 = vadd.f32 %v1427, %v1500
    %v1502 = vpop.f32.mrb[0].mxu0
    %v1503 = vadd.f32 %v1429, %v1502
    %1504 = vdwg.mxu0
    %v1505 = vadd.f32 %v1501, %v266
    %v1506 = vadd.f32 %v1503, %v270
    %v1507 = vxor.u32 %v1505, 2147483648
    %v1508 = vxor.u32 %v1506, 2147483648
    %v1509 = vmul.f32 %v1507, 1.442695
    %v1510 = vpow.pop %v1509
    %v1511 = vmul.f32 %v1508, 1.442695
    %v1512 = vpow.pop %v1511
    %v1513 = vadd.f32 %v1510, 1.0
    %v1514 = vadd.f32 %v1512, 1.0
    %v1515 = vrcp.pop %v1513
    %v1516 = vmul.f32 1.0, %v1515
    %v1517 = vrcp.pop %v1514
    %v1518 = vmul.f32 1.0, %v1517
    %v1519 = vtanh.pop %v1506
    %v1520 = vmul.f32 %v1516, %v1350
    %v1521 = vmul.f32 %v1516, %v1519
    %1523 = vrot.lane.b32.xlu0 %v1521, 64
    %v1524 = vpop.permute.xlu0 %1523
    %v1526 = vadd.f32 %v1520, %v1524
    %v1527 = vtanh.pop %v1526
    %v1528 = vmul.f32 %v1518, %v1527
    %v1529 = vld [vmem:[#allocation8] sm:$0xff]
    %v1530 = vld [vmem:[#allocation8 + $0x8] sm:$0xff]
    %v1531 = vld [vmem:[#allocation8 + $0x10] sm:$0xff]
    %v1532 = vld [vmem:[#allocation8 + $0x18] sm:$0xff]
    %v1533 = vld [vmem:[#allocation8 + $0x20] sm:$0xff]
    %v1534 = vld [vmem:[#allocation8 + $0x28] sm:$0xff]
    %v1535 = vld [vmem:[#allocation8 + $0x30] sm:$0xff]
    %v1536 = vld [vmem:[#allocation8 + $0x38] sm:$0xff]
    %v1537 = vld [vmem:[%s5] sm:$0x1]
    %v1539 = vlaneseq
    %v1540 = vshrl.u32 %v1539, 7
    %v1541 = vsub.s32 0, %v1540
    %v1542 = vrot.slane %v1537, %v1541
    %1545 = vrot.lane.b32.xlu0 %v1528, 64
    %v1546 = vpop.permute.xlu0 %1545
    %v1547 = vsel %vm105, %v1546, 0
    %1549 = vmatprep.subr.mxu0 0.0
    %1550 = vmatpush1.msra.mxu0 %v1529
    %1551 = vmatprep.subr.mxu0 0.0
    %1552 = vmatpush1.msra.mxu0 %v1530
    %1553 = vmatprep.subr.mxu0 0.0
    %1554 = vmatpush1.msra.mxu0 %v1531
    %1555 = vmatprep.subr.mxu0 0.0
    %1556 = vmatpush1.msra.mxu0 %v1532
    %1557 = vmatprep.subr.mxu0 0.0
    %1558 = vmatpush1.msra.mxu0 %v1533
    %1559 = vmatprep.subr.mxu0 0.0
    %1560 = vmatpush1.msra.mxu0 %v1534
    %1561 = vmatprep.subr.mxu0 0.0
    %1562 = vmatpush1.msra.mxu0 %v1535
    %1563 = vmatprep.subr.mxu0 0.0
    %1564 = vmatpush1.msra.mxu0 %v1536
    %1565 = vmatprep.subr.mxu0 0.0
    %1566 = vmatpush1.msra.mxu0 0.0
    %1567 = vmatprep.subr.mxu0 0.0
    %1568 = vmatpush1.msra.mxu0 0.0
    %1569 = vmatprep.subr.mxu0 0.0
    %1570 = vmatpush1.msra.mxu0 0.0
    %1571 = vmatprep.subr.mxu0 0.0
    %1572 = vmatpush1.msra.mxu0 0.0
    %1573 = vmatprep.subr.mxu0 0.0
    %1574 = vmatpush1.msra.mxu0 0.0
    %1575 = vmatprep.subr.mxu0 0.0
    %1576 = vmatpush1.msra.mxu0 0.0
    %1577 = vmatprep.subr.mxu0 0.0
    %1578 = vmatpush1.msra.mxu0 0.0
    %1579 = vmatprep.subr.mxu0 0.0
    %1580 = vmatpush1.msra.mxu0 0.0
    %1581 = vmatprep.subr.mxu0 0.0
    %1582 = vmatpush1.msra.mxu0 0.0
    %1583 = vmatprep.subr.mxu0 0.0
    %1584 = vmatpush1.msra.mxu0 0.0
    %1585 = vmatprep.subr.mxu0 0.0
    %1586 = vmatpush1.msra.mxu0 0.0
    %1587 = vmatprep.subr.mxu0 0.0
    %1588 = vmatpush1.msra.mxu0 0.0
    %1589 = vmatprep.subr.mxu0 0.0
    %1590 = vmatpush1.msra.mxu0 0.0
    %1591 = vmatprep.subr.mxu0 0.0
    %1592 = vmatpush1.msra.mxu0 0.0
    %1593 = vmatprep.subr.mxu0 0.0
    %1594 = vmatpush1.msra.mxu0 0.0
    %1595 = vmatprep.subr.mxu0 0.0
    %1596 = vmatpush1.msra.mxu0 0.0
    %1597 = vmatprep.subr.mxu0 0.0
    %1598 = vmatpush1.msra.mxu0 0.0
    %1599 = vmatprep.subr.mxu0 0.0
    %1600 = vmatpush1.msra.mxu0 0.0
    %1601 = vmatprep.subr.mxu0 0.0
    %1602 = vmatpush1.msra.mxu0 0.0
    %1603 = vmatprep.subr.mxu0 0.0
    %1604 = vmatpush1.msra.mxu0 0.0
    %1605 = vmatprep.subr.mxu0 0.0
    %1606 = vmatpush1.msra.mxu0 0.0
    %1607 = vmatprep.subr.mxu0 0.0
    %1608 = vmatpush1.msra.mxu0 0.0
    %1609 = vmatprep.subr.mxu0 0.0
    %1610 = vmatpush1.msra.mxu0 0.0
    %1611 = vmatprep.subr.mxu0 0.0
    %1612 = vmatpush1.msra.mxu0 0.0
    %1613 = vmatprep.mubr.f32.mxu0 0.0
    %1614 = vmatmul.mubr.f32.gmra.mrb[0].mxu0 %v1547
    %v1615 = vpop.f32.mrb[0].mxu0
    %v1616 = vadd.f32 %v1542, %v1615
    %v1617 = vpop.f32.mrb[0].mxu0
    %1618 = vdwg.mxu0
    %1619 = vst [vmem:[#allocation10] sm:$0xff] %v1616
    // Predicated region
    $region42: #{tpu_custom_call.1} parent=1 // pred_check
      _
    $region43: #{tpu_custom_call.1} parent=1 // pred_check_branch
      %1621 = sbr.rel (0) target = $region45
    $region44: #{tpu_custom_call.1} parent=1 // pred_region
      %s1623 = ssub.s32 128, 128
      %1624 = vsyncadd [#allocation4], %s1623
      %s1626 = sshll.u32 [#allocation10], 4
      %s1627 = int_to_ptr.vmem [resolvable:$true] %s1626
      %1629 = dma.vmem_to_hbm [thread:$0]  %s1627, 128, %s6, [#allocation4]
    $region45: #{tpu_custom_call.1} parent=1 // pred_fallthru
      _
    // Predicated region
    $region46: #{tpu_custom_call.1} parent=1 // pred_check
      _
    $region47: #{tpu_custom_call.1} parent=1 // pred_check_branch
      %1631 = sbr.rel (0) target = $region49
    $region48: #{tpu_custom_call.1} parent=1 // pred_region
      %1632 = dma.done [#allocation4], 128
    $region49: #{tpu_custom_call.1} parent=1 // pred_fallthru
      _
    %1633 = vsyncpa [#allocation3], 1
    %1634 = vsyncpa [#allocation6], 1
    %1635 = vsyncpa [#allocation9], 1
    %1636 = vsyncpa [#allocation4], 1

</llo_original>
